<compile_context>
chip_gen: v5e
topology: v5e:2x2
jax: 0.10.0
libtpu: 0.0.40
codegen_flags: <defaults>
</compile_context>

<pallas_src>
import functools

import numpy as np
import jax
import jax.numpy as jnp
from jax import lax
from jax.experimental import pallas as pl
from jax.experimental.pallas import tpu as pltpu


# --------------------------------------------------------------------------
# helpers
# --------------------------------------------------------------------------
def _padded_bytes(shape, dtype=jnp.float32):
    """Approximate VMEM footprint of an array padded to (8, 128) tiles."""
    shape = tuple(int(s) for s in shape)
    if len(shape) == 0:
        shape = (1, 1)
    elif len(shape) == 1:
        shape = (1,) + shape
    lead = 1
    for s in shape[:-2]:
        lead *= s
    sub = -(-shape[-2] // 8) * 8
    lane = -(-shape[-1] // 128) * 128
    return lead * sub * lane * jnp.dtype(dtype).itemsize


def _vmem_limit(shapes):
    # actual residency + 8 MiB compiler-scratch margin (no grid pipelining in
    # these kernels, so no buffering multiplier); never request the whole
    # physical VMEM — 48 MiB cap is safe on v7x's 64 MiB / TensorCore.
    est = sum(_padded_bytes(s) for s in shapes) + (8 << 20)
    return int(min(max(est, 32 << 20), 48 << 20))


def _unroll(max_iter):
    # fully unroll small static trip counts; cap code size for large ones
    return True if max_iter <= 8 else 8


# --------------------------------------------------------------------------
# Dense path: whole M (and M^T) in VMEM; standard MXU matvecs; unrolled loop.
# --------------------------------------------------------------------------
def _dense_kernel(m_ref, mt_ref, u0_ref, sig_ref, u_out_ref, *, max_iter):
    m = m_ref[...]                      # (O, I) f32, hoisted out of the loop
    mt = mt_ref[...]                    # (I, O) f32

    def body(_, carry):
        u, _sig = carry
        # v = normalize(M @ u)    (row-vector form: u @ M^T, standard contraction)
        v_pre = jnp.dot(u, mt, preferred_element_type=jnp.float32)   # (1, O)
        v = v_pre * (1.0 / (jnp.sqrt(jnp.sum(v_pre * v_pre)) + 1e-12))
        # u = normalize(M^T @ v)  (row-vector form: v @ M, standard contraction)
        u_pre = jnp.dot(v, m, preferred_element_type=jnp.float32)    # (1, I)
        sig = jnp.sqrt(jnp.sum(u_pre * u_pre))   # adjoint identity: == <M u, v>
        u = u_pre * (1.0 / (sig + 1e-12))
        return (u, sig)

    u, sig = lax.fori_loop(0, max_iter, body,
                           (u0_ref[...], jnp.zeros((), jnp.float32)),
                           unroll=_unroll(max_iter))
    sig_ref[...] = jnp.reshape(sig, (1, 1))
    u_out_ref[...] = u


# TODO(synk): for M too large for VMEM (esp. v7x's 64 MiB/TC), keep M in HBM
# (memory_space=pl.ANY) and stream (TILE_O, I) row tiles per matvec with a
# manual double buffer, and/or store M / M^T as bf16 with f32 accumulation.
@functools.partial(jax.jit, static_argnums=(2,))
def _dense_sigma(M, u, max_iter):
    O, I = M.shape
    Mf = M.astype(jnp.float32)
    MTf = jnp.transpose(Mf)                      # host-side; keeps both in-kernel
    u2 = u.astype(jnp.float32).reshape(1, I)     # matvecs transpose-free

    limit = _vmem_limit([(O, I), (I, O), (1, I), (1, 1), (1, I)])
    sig, u_new = pl.pallas_call(
        functools.partial(_dense_kernel, max_iter=int(max_iter)),
        out_shape=(jax.ShapeDtypeStruct((1, 1), jnp.float32),
                   jax.ShapeDtypeStruct((1, I), jnp.float32)),
        in_specs=[pl.BlockSpec(memory_space=pltpu.MemorySpace.VMEM)] * 3,
        out_specs=(pl.BlockSpec(memory_space=pltpu.MemorySpace.VMEM),
                   pl.BlockSpec(memory_space=pltpu.MemorySpace.VMEM)),
        compiler_params=pltpu.CompilerParams(vmem_limit_bytes=limit),
    )(Mf, MTf, u2)
    return sig[0, 0], u_new


# --------------------------------------------------------------------------
# Conv path: lane-dense (C, H*W) feature maps; 3x3 conv == one im2col matmul
# (9 lane-rolled copies stacked along sublanes, single fused mask multiply).
# --------------------------------------------------------------------------
def _conv_kernel(wf_ref, wb_ref, mf_ref, mb_ref, u0_ref, sig_ref, u_out_ref,
                 xcol_f, xcol_b, *, max_iter, C_in, C_out, H, W):
    HW = H * W
    # lane shift per 3x3 tap t = ky*3+kx: output pixel p reads p + (ky-1)*W + (kx-1)
    shifts = [(-((t // 3 - 1) * W + (t % 3 - 1))) % HW for t in range(9)]

    wf = wf_ref[...]       # (C_out, 9*C_in)  im2col-packed forward weights
    wb = wb_ref[...]       # (C_in, 9*C_out)  im2col-packed adjoint weights
    mf = mf_ref[...]       # (9*C_in, HW)     boundary-validity masks (fwd)
    mb = mb_ref[...]       # (9*C_out, HW)    boundary-validity masks (bwd)

    def im2col(xcol_ref, x, c_src, mask):
        # Stack the 9 lane-rolled copies of x along the sublane axis, then zero
        # the out-of-image (wrapped) positions with ONE fused multiply.
        for t in range(9):
            s = shifts[t]
            rolled = x if s == 0 else pltpu.roll(x, shift=s, axis=1)
            xcol_ref[t * c_src:(t + 1) * c_src, :] = rolled
        return xcol_ref[...] * mask

    def body(_, carry):
        u, _sig = carry
        # v = normalize(conv2d(pad(u,1), K)) : one (C_out,9*C_in)@(9*C_in,HW) matmul
        v_pre = jnp.dot(wf, im2col(xcol_f, u, C_in, mf),
                        preferred_element_type=jnp.float32)
        v = v_pre * (1.0 / (jnp.sqrt(jnp.sum(v_pre * v_pre)) + 1e-12))
        # u = normalize(trim1(conv_transpose2d(v, K))) : exact adjoint conv
        u_pre = jnp.dot(wb, im2col(xcol_b, v, C_out, mb),
                        preferred_element_type=jnp.float32)
        sig = jnp.sqrt(jnp.sum(u_pre * u_pre))   # == sum(conv(pad(u_final)) * v)
        u = u_pre * (1.0 / (sig + 1e-12))
        return (u, sig)

    u, sig = lax.fori_loop(0, max_iter, body,
                           (u0_ref[...], jnp.zeros((), jnp.float32)),
                           unroll=_unroll(max_iter))
    sig_ref[...] = jnp.reshape(sig, (1, 1))
    u_out_ref[...] = u


@functools.lru_cache(maxsize=None)
def _tap_masks(H, W):
    """(9, H*W) validity mask per 3x3 tap (1 where the shifted pixel is in-image)."""
    hh, ww = np.meshgrid(np.arange(H), np.arange(W), indexing="ij")
    hh = hh.reshape(-1)
    ww = ww.reshape(-1)
    m = np.zeros((9, H * W), np.float32)
    for t in range(9):
        r, s = t // 3 - 1, t % 3 - 1
        m[t] = ((hh + r >= 0) & (hh + r < H) &
                (ww + s >= 0) & (ww + s < W)).astype(np.float32)
    return m


# TODO(synk): when many same-shaped layers need spectral norms, batch them on a
# leading grid axis (dimension_semantics=("parallel",)) / vmap the wrapper so
# both v7x TensorCores are used and weight DMAs pipeline behind the power loop.
@functools.partial(jax.jit, static_argnums=(2,))
def _conv_sigma(K, u, max_iter):
    C_out, C_in, kh, kw = K.shape
    assert (kh, kw) == (3, 3), "module's conv path assumes 3x3 kernels (pad=1)"
    H, W = int(u.shape[-2]), int(u.shape[-1])
    HW = H * W

    Kf = K.astype(jnp.float32)
    u2 = u.astype(jnp.float32).reshape(C_in, HW)

    # im2col weight packing: w_fwd[co, t*C_in + ci] = K[co, ci, ky, kx], t = ky*3+kx
    w_fwd = jnp.transpose(Kf, (0, 2, 3, 1)).reshape(C_out, 9 * C_in)
    # adjoint (trimmed transposed conv) == conv with flipped, channel-swapped K
    Kb = jnp.transpose(jnp.flip(Kf, axis=(2, 3)), (1, 0, 2, 3))   # (C_in, C_out, 3, 3)
    w_bwd = jnp.transpose(Kb, (0, 2, 3, 1)).reshape(C_in, 9 * C_out)

    # boundary masks, pre-expanded over channels so the kernel applies them with
    # one lane/sublane-dense multiply per conv (no in-loop broadcasts)
    base = _tap_masks(H, W)                                        # (9, HW) np
    mf = jnp.asarray(np.repeat(base[:, None, :], C_in, axis=1).reshape(9 * C_in, HW))
    mb = jnp.asarray(np.repeat(base[:, None, :], C_out, axis=1).reshape(9 * C_out, HW))

    limit = _vmem_limit([(C_out, 9 * C_in), (C_in, 9 * C_out),
                         (9 * C_in, HW), (9 * C_out, HW),
                         (C_in, HW), (1, 1), (C_in, HW),
                         (9 * C_in, HW), (9 * C_out, HW)])

    sig, u_new = pl.pallas_call(
        functools.partial(_conv_kernel, max_iter=int(max_iter),
                          C_in=C_in, C_out=C_out, H=H, W=W),
        out_shape=(jax.ShapeDtypeStruct((1, 1), jnp.float32),
                   jax.ShapeDtypeStruct((C_in, HW), jnp.float32)),
        in_specs=[pl.BlockSpec(memory_space=pltpu.MemorySpace.VMEM)] * 5,
        out_specs=(pl.BlockSpec(memory_space=pltpu.MemorySpace.VMEM),
                   pl.BlockSpec(memory_space=pltpu.MemorySpace.VMEM)),
        scratch_shapes=[
            pltpu.VMEM((9 * C_in, HW), jnp.float32),    # im2col stack (forward)
            pltpu.VMEM((9 * C_out, HW), jnp.float32),   # im2col stack (adjoint)
        ],
        compiler_params=pltpu.CompilerParams(vmem_limit_bytes=limit),
    )(w_fwd, w_bwd, mf, mb, u2)
    return sig[0, 0], u_new


# --------------------------------------------------------------------------
# Module-equivalent wrapper (deterministic u init, like torch.randn+normalize)
# --------------------------------------------------------------------------
class SpectralNormPowerMethod:
    def __init__(self, input_size, eps=1e-8, key=None):
        self.input_size = (tuple(input_size) if not isinstance(input_size, int)
                           else (input_size,))
        self.eps = eps  # stored (unused by forward, same as the PyTorch module)
        if key is None:
            key = jax.random.PRNGKey(0)
        u = jax.random.normal(key, self.input_size, dtype=jnp.float32)
        self.u = u / jnp.linalg.norm(u)

    def __call__(self, M, max_iter):
        # Note: if max_iter == 0 the kernels return sigma == 0 with u unchanged
        # (the PyTorch reference would raise on an undefined `v` instead).
        max_iter = int(max_iter)
        if M.ndim == 4:
            sigma, u_new = _conv_sigma(M, self.u, max_iter)
        elif M.ndim == 2:
            sigma, u_new = _dense_sigma(M, self.u, max_iter)
        else:
            raise ValueError("M must be 2-D (dense) or 4-D (conv kernel)")
        # persist the power-iteration buffer like self.u.data = ... in PyTorch
        self.u = jnp.reshape(u_new, self.input_size)
        return sigma


# --------------------------------------------------------------------------
# NumPy references (mirror the PyTorch code literally)
# --------------------------------------------------------------------------
def _np_normalize(a):
    return a / (np.sqrt((a ** 2).sum()) + 1e-12)


def _np_dense_ref(M, u0, max_iter):
    u = u0.copy()
    v = None
    for _ in range(max_iter):
        v = _np_normalize(M @ u)
        u = _np_normalize(M.T @ v)
    z = M @ u
    return float((z * v).sum())


def _np_conv2d_pad1(x, K):
    Cin, H, W = x.shape
    Cout = K.shape[0]
    xp = np.zeros((Cin, H + 2, W + 2), x.dtype)
    xp[:, 1:-1, 1:-1] = x
    out = np.zeros((Cout, H, W), x.dtype)
    for co in range(Cout):
        for ci in range(Cin):
            for dy in range(3):
                for dx in range(3):
                    out[co] += K[co, ci, dy, dx] * xp[ci, dy:dy + H, dx:dx + W]
    return out


def _np_convT_trim1(v, K):
    Cout, H, W = v.shape
    Cin = K.shape[1]
    full = np.zeros((Cin, H + 2, W + 2), v.dtype)
    for co in range(Cout):
        for ci in range(Cin):
            for dy in range(3):
                for dx in range(3):
                    full[ci, dy:dy + H, dx:dx + W] += K[co, ci, dy, dx] * v[co]
    return full[:, 1:-1, 1:-1]


def _np_conv_ref(K, u0, max_iter):
    u = u0.copy()
    v = None
    for _ in range(max_iter):
        v = _np_normalize(_np_conv2d_pad1(u, K))
        u = _np_normalize(_np_convT_trim1(v, K))
    z = _np_conv2d_pad1(u, K)
    return float((z * v).sum())


if __name__ == "__main__":
    key = jax.random.PRNGKey(0)
    k1, k2, k3, k4 = jax.random.split(key, 4)
    max_iter = 3

    # ---- conv path: kernel (C_out, C_in, 3, 3), u of shape (1, C_in, H, W) ----
    C_out, C_in, H, W = 4, 4, 16, 16
    K_conv = jax.random.normal(k1, (C_out, C_in, 3, 3), dtype=jnp.float32) * 0.5
    sn_conv = SpectralNormPowerMethod((1, C_in, H, W), key=k2)
    u0_conv = np.asarray(sn_conv.u, np.float32).reshape(C_in, H, W)
    sigma_conv = sn_conv(K_conv, max_iter)

    # ---- dense path: M (out_features, in_features), u of shape (in_features,) ----
    O, I = 16, 32
    M_dense = jax.random.normal(k3, (O, I), dtype=jnp.float32) * 0.1
    sn_dense = SpectralNormPowerMethod((I,), key=k4)
    u0_dense = np.asarray(sn_dense.u, np.float32)
    sigma_dense = sn_dense(M_dense, max_iter)

    sigma_conv, sigma_dense = jax.block_until_ready((sigma_conv, sigma_dense))

    # reference checks (float32 numpy mirror of the PyTorch forward)
    ref_conv = _np_conv_ref(np.asarray(K_conv, np.float32), u0_conv, max_iter)
    ref_dense = _np_dense_ref(np.asarray(M_dense, np.float32), u0_dense, max_iter)
    np.testing.assert_allclose(float(sigma_conv), ref_conv, rtol=1e-2, atol=1e-2)
    np.testing.assert_allclose(float(sigma_dense), ref_dense, rtol=1e-2, atol=1e-2)

    # the persisted power-iteration buffers should stay unit-norm
    np.testing.assert_allclose(float(jnp.linalg.norm(sn_dense.u)), 1.0, atol=1e-3)
    np.testing.assert_allclose(float(jnp.linalg.norm(sn_conv.u)), 1.0, atol=1e-3)

    print("KERNEL_OK")
</pallas_src>

<mosaic_0001>
module attributes {stable_mosaic.version = 11 : i64} {
  func.func @_conv_kernel(%arg0: memref<4x36xf32, #tpu.memory_space<vmem>>, %arg1: memref<4x36xf32, #tpu.memory_space<vmem>>, %arg2: memref<36x256xf32, #tpu.memory_space<vmem>>, %arg3: memref<36x256xf32, #tpu.memory_space<vmem>>, %arg4: memref<4x256xf32, #tpu.memory_space<vmem>>, %arg5: memref<1x1xf32, #tpu.memory_space<vmem>>, %arg6: memref<4x256xf32, #tpu.memory_space<vmem>>, %arg7: memref<36x256xf32, #tpu.memory_space<vmem>>, %arg8: memref<36x256xf32, #tpu.memory_space<vmem>>) attributes {dimension_semantics = [], scalar_prefetch = 0 : i64, scratch_operands = 2 : i64, tpu.core_type = #tpu.core_type<tc>} {
    %c0 = arith.constant 0 : index
    %c0_0 = arith.constant 0 : index
    %0 = vector.load %arg0[%c0, %c0_0] : memref<4x36xf32, #tpu.memory_space<vmem>>, vector<4x36xf32>
    %c0_1 = arith.constant 0 : index
    %c0_2 = arith.constant 0 : index
    %1 = vector.load %arg1[%c0_1, %c0_2] : memref<4x36xf32, #tpu.memory_space<vmem>>, vector<4x36xf32>
    %c0_3 = arith.constant 0 : index
    %c0_4 = arith.constant 0 : index
    %2 = vector.load %arg2[%c0_3, %c0_4] : memref<36x256xf32, #tpu.memory_space<vmem>>, vector<36x256xf32>
    %c0_5 = arith.constant 0 : index
    %c0_6 = arith.constant 0 : index
    %3 = vector.load %arg3[%c0_5, %c0_6] : memref<36x256xf32, #tpu.memory_space<vmem>>, vector<36x256xf32>
    %c0_7 = arith.constant 0 : index
    %c0_8 = arith.constant 0 : index
    %4 = vector.load %arg4[%c0_7, %c0_8] : memref<4x256xf32, #tpu.memory_space<vmem>>, vector<4x256xf32>
    %cst = arith.constant 0.000000e+00 : f32
    %c0_i32 = arith.constant 0 : i32
    %c17_i32 = arith.constant 17 : i32
    %5 = tpu.dynamic_rotate %4 by %c17_i32 dim 1 : vector<4x256xf32>, i32 -> vector<4x256xf32>
    %c0_9 = arith.constant 0 : index
    %c0_10 = arith.constant 0 : index
    %6 = vector.load %arg7[%c0_9, %c0_10] : memref<36x256xf32, #tpu.memory_space<vmem>>, vector<4x256xf32>
    tpu.vector_store %arg7[%c0_9, %c0_10], %5 {strides = array<i32>} : memref<36x256xf32, #tpu.memory_space<vmem>>, vector<4x256xf32>,
    %c16_i32 = arith.constant 16 : i32
    %7 = tpu.dynamic_rotate %4 by %c16_i32 dim 1 : vector<4x256xf32>, i32 -> vector<4x256xf32>
    %c4 = arith.constant 4 : index
    %c0_11 = arith.constant 0 : index
    %8 = vector.load %arg7[%c4, %c0_11] : memref<36x256xf32, #tpu.memory_space<vmem>>, vector<4x256xf32>
    tpu.vector_store %arg7[%c4, %c0_11], %7 {strides = array<i32>} : memref<36x256xf32, #tpu.memory_space<vmem>>, vector<4x256xf32>,
    %c15_i32 = arith.constant 15 : i32
    %9 = tpu.dynamic_rotate %4 by %c15_i32 dim 1 : vector<4x256xf32>, i32 -> vector<4x256xf32>
    %c8 = arith.constant 8 : index
    %c0_12 = arith.constant 0 : index
    %10 = vector.load %arg7[%c8, %c0_12] : memref<36x256xf32, #tpu.memory_space<vmem>>, vector<4x256xf32>
    tpu.vector_store %arg7[%c8, %c0_12], %9 {strides = array<i32>} : memref<36x256xf32, #tpu.memory_space<vmem>>, vector<4x256xf32>,
    %c1_i32 = arith.constant 1 : i32
    %11 = tpu.dynamic_rotate %4 by %c1_i32 dim 1 : vector<4x256xf32>, i32 -> vector<4x256xf32>
    %c12 = arith.constant 12 : index
    %c0_13 = arith.constant 0 : index
    %12 = vector.load %arg7[%c12, %c0_13] : memref<36x256xf32, #tpu.memory_space<vmem>>, vector<4x256xf32>
    tpu.vector_store %arg7[%c12, %c0_13], %11 {strides = array<i32>} : memref<36x256xf32, #tpu.memory_space<vmem>>, vector<4x256xf32>,
    %c16 = arith.constant 16 : index
    %c0_14 = arith.constant 0 : index
    %13 = vector.load %arg7[%c16, %c0_14] : memref<36x256xf32, #tpu.memory_space<vmem>>, vector<4x256xf32>
    tpu.vector_store %arg7[%c16, %c0_14], %4 {strides = array<i32>} : memref<36x256xf32, #tpu.memory_space<vmem>>, vector<4x256xf32>,
    %c255_i32 = arith.constant 255 : i32
    %14 = tpu.dynamic_rotate %4 by %c255_i32 dim 1 : vector<4x256xf32>, i32 -> vector<4x256xf32>
    %c20 = arith.constant 20 : index
    %c0_15 = arith.constant 0 : index
    %15 = vector.load %arg7[%c20, %c0_15] : memref<36x256xf32, #tpu.memory_space<vmem>>, vector<4x256xf32>
    tpu.vector_store %arg7[%c20, %c0_15], %14 {strides = array<i32>} : memref<36x256xf32, #tpu.memory_space<vmem>>, vector<4x256xf32>,
    %c241_i32 = arith.constant 241 : i32
    %16 = tpu.dynamic_rotate %4 by %c241_i32 dim 1 : vector<4x256xf32>, i32 -> vector<4x256xf32>
    %c24 = arith.constant 24 : index
    %c0_16 = arith.constant 0 : index
    %17 = vector.load %arg7[%c24, %c0_16] : memref<36x256xf32, #tpu.memory_space<vmem>>, vector<4x256xf32>
    tpu.vector_store %arg7[%c24, %c0_16], %16 {strides = array<i32>} : memref<36x256xf32, #tpu.memory_space<vmem>>, vector<4x256xf32>,
    %c240_i32 = arith.constant 240 : i32
    %18 = tpu.dynamic_rotate %4 by %c240_i32 dim 1 : vector<4x256xf32>, i32 -> vector<4x256xf32>
    %c28 = arith.constant 28 : index
    %c0_17 = arith.constant 0 : index
    %19 = vector.load %arg7[%c28, %c0_17] : memref<36x256xf32, #tpu.memory_space<vmem>>, vector<4x256xf32>
    tpu.vector_store %arg7[%c28, %c0_17], %18 {strides = array<i32>} : memref<36x256xf32, #tpu.memory_space<vmem>>, vector<4x256xf32>,
    %c239_i32 = arith.constant 239 : i32
    %20 = tpu.dynamic_rotate %4 by %c239_i32 dim 1 : vector<4x256xf32>, i32 -> vector<4x256xf32>
    %c32 = arith.constant 32 : index
    %c0_18 = arith.constant 0 : index
    %21 = vector.load %arg7[%c32, %c0_18] : memref<36x256xf32, #tpu.memory_space<vmem>>, vector<4x256xf32>
    tpu.vector_store %arg7[%c32, %c0_18], %20 {strides = array<i32>} : memref<36x256xf32, #tpu.memory_space<vmem>>, vector<4x256xf32>,
    %c0_19 = arith.constant 0 : index
    %c0_20 = arith.constant 0 : index
    %22 = vector.load %arg7[%c0_19, %c0_20] : memref<36x256xf32, #tpu.memory_space<vmem>>, vector<36x256xf32>
    %23 = arith.mulf %22, %2 : vector<36x256xf32>
    %cst_21 = arith.constant dense<0.000000e+00> : vector<4x256xf32>
    %24 = tpu.matmul %0, %23, %cst_21 {dimension_numbers = #tpu.dot_dimension_numbers<[1], [0], [0], [1], [0, 0, 1, 1], [], []>} : vector<4x36xf32>, vector<36x256xf32>, vector<4x256xf32> -> vector<4x256xf32>
    %25 = arith.mulf %24, %24 : vector<4x256xf32>
    %26 = vector.shape_cast %25 : vector<4x256xf32> to vector<1x4x256xf32>
    %cst_22 = arith.constant dense<0.000000e+00> : vector<1xf32>
    %27 = vector.multi_reduction <add>, %26, %cst_22 [1, 2] : vector<1x4x256xf32> to vector<1xf32>
    %28 = vector.shape_cast %27 : vector<1xf32> to vector<1x1x1xf32>
    %29 = vector.extract %28[0, 0, 0] : f32 from vector<1x1x1xf32>
    %30 = math.sqrt %29 : f32
    %cst_23 = arith.constant 9.99999996E-13 : f32
    %31 = arith.addf %30, %cst_23 : f32
    %cst_24 = arith.constant 1.000000e+00 : f32
    %32 = arith.divf %cst_24, %31 : f32
    %33 = vector.broadcast %32 : f32 to vector<4x256xf32>
    %34 = arith.mulf %24, %33 : vector<4x256xf32>
    %c17_i32_25 = arith.constant 17 : i32
    %35 = tpu.dynamic_rotate %34 by %c17_i32_25 dim 1 : vector<4x256xf32>, i32 -> vector<4x256xf32>
    %c0_26 = arith.constant 0 : index
    %c0_27 = arith.constant 0 : index
    %36 = vector.load %arg8[%c0_26, %c0_27] : memref<36x256xf32, #tpu.memory_space<vmem>>, vector<4x256xf32>
    tpu.vector_store %arg8[%c0_26, %c0_27], %35 {strides = array<i32>} : memref<36x256xf32, #tpu.memory_space<vmem>>, vector<4x256xf32>,
    %c16_i32_28 = arith.constant 16 : i32
    %37 = tpu.dynamic_rotate %34 by %c16_i32_28 dim 1 : vector<4x256xf32>, i32 -> vector<4x256xf32>
    %c4_29 = arith.constant 4 : index
    %c0_30 = arith.constant 0 : index
    %38 = vector.load %arg8[%c4_29, %c0_30] : memref<36x256xf32, #tpu.memory_space<vmem>>, vector<4x256xf32>
    tpu.vector_store %arg8[%c4_29, %c0_30], %37 {strides = array<i32>} : memref<36x256xf32, #tpu.memory_space<vmem>>, vector<4x256xf32>,
    %c15_i32_31 = arith.constant 15 : i32
    %39 = tpu.dynamic_rotate %34 by %c15_i32_31 dim 1 : vector<4x256xf32>, i32 -> vector<4x256xf32>
    %c8_32 = arith.constant 8 : index
    %c0_33 = arith.constant 0 : index
    %40 = vector.load %arg8[%c8_32, %c0_33] : memref<36x256xf32, #tpu.memory_space<vmem>>, vector<4x256xf32>
    tpu.vector_store %arg8[%c8_32, %c0_33], %39 {strides = array<i32>} : memref<36x256xf32, #tpu.memory_space<vmem>>, vector<4x256xf32>,
    %c1_i32_34 = arith.constant 1 : i32
    %41 = tpu.dynamic_rotate %34 by %c1_i32_34 dim 1 : vector<4x256xf32>, i32 -> vector<4x256xf32>
    %c12_35 = arith.constant 12 : index
    %c0_36 = arith.constant 0 : index
    %42 = vector.load %arg8[%c12_35, %c0_36] : memref<36x256xf32, #tpu.memory_space<vmem>>, vector<4x256xf32>
    tpu.vector_store %arg8[%c12_35, %c0_36], %41 {strides = array<i32>} : memref<36x256xf32, #tpu.memory_space<vmem>>, vector<4x256xf32>,
    %c16_37 = arith.constant 16 : index
    %c0_38 = arith.constant 0 : index
    %43 = vector.load %arg8[%c16_37, %c0_38] : memref<36x256xf32, #tpu.memory_space<vmem>>, vector<4x256xf32>
    tpu.vector_store %arg8[%c16_37, %c0_38], %34 {strides = array<i32>} : memref<36x256xf32, #tpu.memory_space<vmem>>, vector<4x256xf32>,
    %c255_i32_39 = arith.constant 255 : i32
    %44 = tpu.dynamic_rotate %34 by %c255_i32_39 dim 1 : vector<4x256xf32>, i32 -> vector<4x256xf32>
    %c20_40 = arith.constant 20 : index
    %c0_41 = arith.constant 0 : index
    %45 = vector.load %arg8[%c20_40, %c0_41] : memref<36x256xf32, #tpu.memory_space<vmem>>, vector<4x256xf32>
    tpu.vector_store %arg8[%c20_40, %c0_41], %44 {strides = array<i32>} : memref<36x256xf32, #tpu.memory_space<vmem>>, vector<4x256xf32>,
    %c241_i32_42 = arith.constant 241 : i32
    %46 = tpu.dynamic_rotate %34 by %c241_i32_42 dim 1 : vector<4x256xf32>, i32 -> vector<4x256xf32>
    %c24_43 = arith.constant 24 : index
    %c0_44 = arith.constant 0 : index
    %47 = vector.load %arg8[%c24_43, %c0_44] : memref<36x256xf32, #tpu.memory_space<vmem>>, vector<4x256xf32>
    tpu.vector_store %arg8[%c24_43, %c0_44], %46 {strides = array<i32>} : memref<36x256xf32, #tpu.memory_space<vmem>>, vector<4x256xf32>,
    %c240_i32_45 = arith.constant 240 : i32
    %48 = tpu.dynamic_rotate %34 by %c240_i32_45 dim 1 : vector<4x256xf32>, i32 -> vector<4x256xf32>
    %c28_46 = arith.constant 28 : index
    %c0_47 = arith.constant 0 : index
    %49 = vector.load %arg8[%c28_46, %c0_47] : memref<36x256xf32, #tpu.memory_space<vmem>>, vector<4x256xf32>
    tpu.vector_store %arg8[%c28_46, %c0_47], %48 {strides = array<i32>} : memref<36x256xf32, #tpu.memory_space<vmem>>, vector<4x256xf32>,
    %c239_i32_48 = arith.constant 239 : i32
    %50 = tpu.dynamic_rotate %34 by %c239_i32_48 dim 1 : vector<4x256xf32>, i32 -> vector<4x256xf32>
    %c32_49 = arith.constant 32 : index
    %c0_50 = arith.constant 0 : index
    %51 = vector.load %arg8[%c32_49, %c0_50] : memref<36x256xf32, #tpu.memory_space<vmem>>, vector<4x256xf32>
    tpu.vector_store %arg8[%c32_49, %c0_50], %50 {strides = array<i32>} : memref<36x256xf32, #tpu.memory_space<vmem>>, vector<4x256xf32>,
    %c0_51 = arith.constant 0 : index
    %c0_52 = arith.constant 0 : index
    %52 = vector.load %arg8[%c0_51, %c0_52] : memref<36x256xf32, #tpu.memory_space<vmem>>, vector<36x256xf32>
    %53 = arith.mulf %52, %3 : vector<36x256xf32>
    %cst_53 = arith.constant dense<0.000000e+00> : vector<4x256xf32>
    %54 = tpu.matmul %1, %53, %cst_53 {dimension_numbers = #tpu.dot_dimension_numbers<[1], [0], [0], [1], [0, 0, 1, 1], [], []>} : vector<4x36xf32>, vector<36x256xf32>, vector<4x256xf32> -> vector<4x256xf32>
    %55 = arith.mulf %54, %54 : vector<4x256xf32>
    %56 = vector.shape_cast %55 : vector<4x256xf32> to vector<1x4x256xf32>
    %cst_54 = arith.constant dense<0.000000e+00> : vector<1xf32>
    %57 = vector.multi_reduction <add>, %56, %cst_54 [1, 2] : vector<1x4x256xf32> to vector<1xf32>
    %58 = vector.shape_cast %57 : vector<1xf32> to vector<1x1x1xf32>
    %59 = vector.extract %58[0, 0, 0] : f32 from vector<1x1x1xf32>
    %60 = math.sqrt %59 : f32
    %cst_55 = arith.constant 9.99999996E-13 : f32
    %61 = arith.addf %60, %cst_55 : f32
    %cst_56 = arith.constant 1.000000e+00 : f32
    %62 = arith.divf %cst_56, %61 : f32
    %63 = vector.broadcast %62 : f32 to vector<4x256xf32>
    %64 = arith.mulf %54, %63 : vector<4x256xf32>
    %c1_i32_57 = arith.constant 1 : i32
    %c17_i32_58 = arith.constant 17 : i32
    %65 = tpu.dynamic_rotate %64 by %c17_i32_58 dim 1 : vector<4x256xf32>, i32 -> vector<4x256xf32>
    %c0_59 = arith.constant 0 : index
    %c0_60 = arith.constant 0 : index
    %66 = vector.load %arg7[%c0_59, %c0_60] : memref<36x256xf32, #tpu.memory_space<vmem>>, vector<4x256xf32>
    tpu.vector_store %arg7[%c0_59, %c0_60], %65 {strides = array<i32>} : memref<36x256xf32, #tpu.memory_space<vmem>>, vector<4x256xf32>,
    %c16_i32_61 = arith.constant 16 : i32
    %67 = tpu.dynamic_rotate %64 by %c16_i32_61 dim 1 : vector<4x256xf32>, i32 -> vector<4x256xf32>
    %c4_62 = arith.constant 4 : index
    %c0_63 = arith.constant 0 : index
    %68 = vector.load %arg7[%c4_62, %c0_63] : memref<36x256xf32, #tpu.memory_space<vmem>>, vector<4x256xf32>
    tpu.vector_store %arg7[%c4_62, %c0_63], %67 {strides = array<i32>} : memref<36x256xf32, #tpu.memory_space<vmem>>, vector<4x256xf32>,
    %c15_i32_64 = arith.constant 15 : i32
    %69 = tpu.dynamic_rotate %64 by %c15_i32_64 dim 1 : vector<4x256xf32>, i32 -> vector<4x256xf32>
    %c8_65 = arith.constant 8 : index
    %c0_66 = arith.constant 0 : index
    %70 = vector.load %arg7[%c8_65, %c0_66] : memref<36x256xf32, #tpu.memory_space<vmem>>, vector<4x256xf32>
    tpu.vector_store %arg7[%c8_65, %c0_66], %69 {strides = array<i32>} : memref<36x256xf32, #tpu.memory_space<vmem>>, vector<4x256xf32>,
    %c1_i32_67 = arith.constant 1 : i32
    %71 = tpu.dynamic_rotate %64 by %c1_i32_67 dim 1 : vector<4x256xf32>, i32 -> vector<4x256xf32>
    %c12_68 = arith.constant 12 : index
    %c0_69 = arith.constant 0 : index
    %72 = vector.load %arg7[%c12_68, %c0_69] : memref<36x256xf32, #tpu.memory_space<vmem>>, vector<4x256xf32>
    tpu.vector_store %arg7[%c12_68, %c0_69], %71 {strides = array<i32>} : memref<36x256xf32, #tpu.memory_space<vmem>>, vector<4x256xf32>,
    %c16_70 = arith.constant 16 : index
    %c0_71 = arith.constant 0 : index
    %73 = vector.load %arg7[%c16_70, %c0_71] : memref<36x256xf32, #tpu.memory_space<vmem>>, vector<4x256xf32>
    tpu.vector_store %arg7[%c16_70, %c0_71], %64 {strides = array<i32>} : memref<36x256xf32, #tpu.memory_space<vmem>>, vector<4x256xf32>,
    %c255_i32_72 = arith.constant 255 : i32
    %74 = tpu.dynamic_rotate %64 by %c255_i32_72 dim 1 : vector<4x256xf32>, i32 -> vector<4x256xf32>
    %c20_73 = arith.constant 20 : index
    %c0_74 = arith.constant 0 : index
    %75 = vector.load %arg7[%c20_73, %c0_74] : memref<36x256xf32, #tpu.memory_space<vmem>>, vector<4x256xf32>
    tpu.vector_store %arg7[%c20_73, %c0_74], %74 {strides = array<i32>} : memref<36x256xf32, #tpu.memory_space<vmem>>, vector<4x256xf32>,
    %c241_i32_75 = arith.constant 241 : i32
    %76 = tpu.dynamic_rotate %64 by %c241_i32_75 dim 1 : vector<4x256xf32>, i32 -> vector<4x256xf32>
    %c24_76 = arith.constant 24 : index
    %c0_77 = arith.constant 0 : index
    %77 = vector.load %arg7[%c24_76, %c0_77] : memref<36x256xf32, #tpu.memory_space<vmem>>, vector<4x256xf32>
    tpu.vector_store %arg7[%c24_76, %c0_77], %76 {strides = array<i32>} : memref<36x256xf32, #tpu.memory_space<vmem>>, vector<4x256xf32>,
    %c240_i32_78 = arith.constant 240 : i32
    %78 = tpu.dynamic_rotate %64 by %c240_i32_78 dim 1 : vector<4x256xf32>, i32 -> vector<4x256xf32>
    %c28_79 = arith.constant 28 : index
    %c0_80 = arith.constant 0 : index
    %79 = vector.load %arg7[%c28_79, %c0_80] : memref<36x256xf32, #tpu.memory_space<vmem>>, vector<4x256xf32>
    tpu.vector_store %arg7[%c28_79, %c0_80], %78 {strides = array<i32>} : memref<36x256xf32, #tpu.memory_space<vmem>>, vector<4x256xf32>,
    %c239_i32_81 = arith.constant 239 : i32
    %80 = tpu.dynamic_rotate %64 by %c239_i32_81 dim 1 : vector<4x256xf32>, i32 -> vector<4x256xf32>
    %c32_82 = arith.constant 32 : index
    %c0_83 = arith.constant 0 : index
    %81 = vector.load %arg7[%c32_82, %c0_83] : memref<36x256xf32, #tpu.memory_space<vmem>>, vector<4x256xf32>
    tpu.vector_store %arg7[%c32_82, %c0_83], %80 {strides = array<i32>} : memref<36x256xf32, #tpu.memory_space<vmem>>, vector<4x256xf32>,
    %c0_84 = arith.constant 0 : index
    %c0_85 = arith.constant 0 : index
    %82 = vector.load %arg7[%c0_84, %c0_85] : memref<36x256xf32, #tpu.memory_space<vmem>>, vector<36x256xf32>
    %83 = arith.mulf %82, %2 : vector<36x256xf32>
    %cst_86 = arith.constant dense<0.000000e+00> : vector<4x256xf32>
    %84 = tpu.matmul %0, %83, %cst_86 {dimension_numbers = #tpu.dot_dimension_numbers<[1], [0], [0], [1], [0, 0, 1, 1], [], []>} : vector<4x36xf32>, vector<36x256xf32>, vector<4x256xf32> -> vector<4x256xf32>
    %85 = arith.mulf %84, %84 : vector<4x256xf32>
    %86 = vector.shape_cast %85 : vector<4x256xf32> to vector<1x4x256xf32>
    %cst_87 = arith.constant dense<0.000000e+00> : vector<1xf32>
    %87 = vector.multi_reduction <add>, %86, %cst_87 [1, 2] : vector<1x4x256xf32> to vector<1xf32>
    %88 = vector.shape_cast %87 : vector<1xf32> to vector<1x1x1xf32>
    %89 = vector.extract %88[0, 0, 0] : f32 from vector<1x1x1xf32>
    %90 = math.sqrt %89 : f32
    %cst_88 = arith.constant 9.99999996E-13 : f32
    %91 = arith.addf %90, %cst_88 : f32
    %cst_89 = arith.constant 1.000000e+00 : f32
    %92 = arith.divf %cst_89, %91 : f32
    %93 = vector.broadcast %92 : f32 to vector<4x256xf32>
    %94 = arith.mulf %84, %93 : vector<4x256xf32>
    %c17_i32_90 = arith.constant 17 : i32
    %95 = tpu.dynamic_rotate %94 by %c17_i32_90 dim 1 : vector<4x256xf32>, i32 -> vector<4x256xf32>
    %c0_91 = arith.constant 0 : index
    %c0_92 = arith.constant 0 : index
    %96 = vector.load %arg8[%c0_91, %c0_92] : memref<36x256xf32, #tpu.memory_space<vmem>>, vector<4x256xf32>
    tpu.vector_store %arg8[%c0_91, %c0_92], %95 {strides = array<i32>} : memref<36x256xf32, #tpu.memory_space<vmem>>, vector<4x256xf32>,
    %c16_i32_93 = arith.constant 16 : i32
    %97 = tpu.dynamic_rotate %94 by %c16_i32_93 dim 1 : vector<4x256xf32>, i32 -> vector<4x256xf32>
    %c4_94 = arith.constant 4 : index
    %c0_95 = arith.constant 0 : index
    %98 = vector.load %arg8[%c4_94, %c0_95] : memref<36x256xf32, #tpu.memory_space<vmem>>, vector<4x256xf32>
    tpu.vector_store %arg8[%c4_94, %c0_95], %97 {strides = array<i32>} : memref<36x256xf32, #tpu.memory_space<vmem>>, vector<4x256xf32>,
    %c15_i32_96 = arith.constant 15 : i32
    %99 = tpu.dynamic_rotate %94 by %c15_i32_96 dim 1 : vector<4x256xf32>, i32 -> vector<4x256xf32>
    %c8_97 = arith.constant 8 : index
    %c0_98 = arith.constant 0 : index
    %100 = vector.load %arg8[%c8_97, %c0_98] : memref<36x256xf32, #tpu.memory_space<vmem>>, vector<4x256xf32>
    tpu.vector_store %arg8[%c8_97, %c0_98], %99 {strides = array<i32>} : memref<36x256xf32, #tpu.memory_space<vmem>>, vector<4x256xf32>,
    %c1_i32_99 = arith.constant 1 : i32
    %101 = tpu.dynamic_rotate %94 by %c1_i32_99 dim 1 : vector<4x256xf32>, i32 -> vector<4x256xf32>
    %c12_100 = arith.constant 12 : index
    %c0_101 = arith.constant 0 : index
    %102 = vector.load %arg8[%c12_100, %c0_101] : memref<36x256xf32, #tpu.memory_space<vmem>>, vector<4x256xf32>
    tpu.vector_store %arg8[%c12_100, %c0_101], %101 {strides = array<i32>} : memref<36x256xf32, #tpu.memory_space<vmem>>, vector<4x256xf32>,
    %c16_102 = arith.constant 16 : index
    %c0_103 = arith.constant 0 : index
    %103 = vector.load %arg8[%c16_102, %c0_103] : memref<36x256xf32, #tpu.memory_space<vmem>>, vector<4x256xf32>
    tpu.vector_store %arg8[%c16_102, %c0_103], %94 {strides = array<i32>} : memref<36x256xf32, #tpu.memory_space<vmem>>, vector<4x256xf32>,
    %c255_i32_104 = arith.constant 255 : i32
    %104 = tpu.dynamic_rotate %94 by %c255_i32_104 dim 1 : vector<4x256xf32>, i32 -> vector<4x256xf32>
    %c20_105 = arith.constant 20 : index
    %c0_106 = arith.constant 0 : index
    %105 = vector.load %arg8[%c20_105, %c0_106] : memref<36x256xf32, #tpu.memory_space<vmem>>, vector<4x256xf32>
    tpu.vector_store %arg8[%c20_105, %c0_106], %104 {strides = array<i32>} : memref<36x256xf32, #tpu.memory_space<vmem>>, vector<4x256xf32>,
    %c241_i32_107 = arith.constant 241 : i32
    %106 = tpu.dynamic_rotate %94 by %c241_i32_107 dim 1 : vector<4x256xf32>, i32 -> vector<4x256xf32>
    %c24_108 = arith.constant 24 : index
    %c0_109 = arith.constant 0 : index
    %107 = vector.load %arg8[%c24_108, %c0_109] : memref<36x256xf32, #tpu.memory_space<vmem>>, vector<4x256xf32>
    tpu.vector_store %arg8[%c24_108, %c0_109], %106 {strides = array<i32>} : memref<36x256xf32, #tpu.memory_space<vmem>>, vector<4x256xf32>,
    %c240_i32_110 = arith.constant 240 : i32
    %108 = tpu.dynamic_rotate %94 by %c240_i32_110 dim 1 : vector<4x256xf32>, i32 -> vector<4x256xf32>
    %c28_111 = arith.constant 28 : index
    %c0_112 = arith.constant 0 : index
    %109 = vector.load %arg8[%c28_111, %c0_112] : memref<36x256xf32, #tpu.memory_space<vmem>>, vector<4x256xf32>
    tpu.vector_store %arg8[%c28_111, %c0_112], %108 {strides = array<i32>} : memref<36x256xf32, #tpu.memory_space<vmem>>, vector<4x256xf32>,
    %c239_i32_113 = arith.constant 239 : i32
    %110 = tpu.dynamic_rotate %94 by %c239_i32_113 dim 1 : vector<4x256xf32>, i32 -> vector<4x256xf32>
    %c32_114 = arith.constant 32 : index
    %c0_115 = arith.constant 0 : index
    %111 = vector.load %arg8[%c32_114, %c0_115] : memref<36x256xf32, #tpu.memory_space<vmem>>, vector<4x256xf32>
    tpu.vector_store %arg8[%c32_114, %c0_115], %110 {strides = array<i32>} : memref<36x256xf32, #tpu.memory_space<vmem>>, vector<4x256xf32>,
    %c0_116 = arith.constant 0 : index
    %c0_117 = arith.constant 0 : index
    %112 = vector.load %arg8[%c0_116, %c0_117] : memref<36x256xf32, #tpu.memory_space<vmem>>, vector<36x256xf32>
    %113 = arith.mulf %112, %3 : vector<36x256xf32>
    %cst_118 = arith.constant dense<0.000000e+00> : vector<4x256xf32>
    %114 = tpu.matmul %1, %113, %cst_118 {dimension_numbers = #tpu.dot_dimension_numbers<[1], [0], [0], [1], [0, 0, 1, 1], [], []>} : vector<4x36xf32>, vector<36x256xf32>, vector<4x256xf32> -> vector<4x256xf32>
    %115 = arith.mulf %114, %114 : vector<4x256xf32>
    %116 = vector.shape_cast %115 : vector<4x256xf32> to vector<1x4x256xf32>
    %cst_119 = arith.constant dense<0.000000e+00> : vector<1xf32>
    %117 = vector.multi_reduction <add>, %116, %cst_119 [1, 2] : vector<1x4x256xf32> to vector<1xf32>
    %118 = vector.shape_cast %117 : vector<1xf32> to vector<1x1x1xf32>
    %119 = vector.extract %118[0, 0, 0] : f32 from vector<1x1x1xf32>
    %120 = math.sqrt %119 : f32
    %cst_120 = arith.constant 9.99999996E-13 : f32
    %121 = arith.addf %120, %cst_120 : f32
    %cst_121 = arith.constant 1.000000e+00 : f32
    %122 = arith.divf %cst_121, %121 : f32
    %123 = vector.broadcast %122 : f32 to vector<4x256xf32>
    %124 = arith.mulf %114, %123 : vector<4x256xf32>
    %c2_i32 = arith.constant 2 : i32
    %c17_i32_122 = arith.constant 17 : i32
    %125 = tpu.dynamic_rotate %124 by %c17_i32_122 dim 1 : vector<4x256xf32>, i32 -> vector<4x256xf32>
    %c0_123 = arith.constant 0 : index
    %c0_124 = arith.constant 0 : index
    %126 = vector.load %arg7[%c0_123, %c0_124] : memref<36x256xf32, #tpu.memory_space<vmem>>, vector<4x256xf32>
    tpu.vector_store %arg7[%c0_123, %c0_124], %125 {strides = array<i32>} : memref<36x256xf32, #tpu.memory_space<vmem>>, vector<4x256xf32>,
    %c16_i32_125 = arith.constant 16 : i32
    %127 = tpu.dynamic_rotate %124 by %c16_i32_125 dim 1 : vector<4x256xf32>, i32 -> vector<4x256xf32>
    %c4_126 = arith.constant 4 : index
    %c0_127 = arith.constant 0 : index
    %128 = vector.load %arg7[%c4_126, %c0_127] : memref<36x256xf32, #tpu.memory_space<vmem>>, vector<4x256xf32>
    tpu.vector_store %arg7[%c4_126, %c0_127], %127 {strides = array<i32>} : memref<36x256xf32, #tpu.memory_space<vmem>>, vector<4x256xf32>,
    %c15_i32_128 = arith.constant 15 : i32
    %129 = tpu.dynamic_rotate %124 by %c15_i32_128 dim 1 : vector<4x256xf32>, i32 -> vector<4x256xf32>
    %c8_129 = arith.constant 8 : index
    %c0_130 = arith.constant 0 : index
    %130 = vector.load %arg7[%c8_129, %c0_130] : memref<36x256xf32, #tpu.memory_space<vmem>>, vector<4x256xf32>
    tpu.vector_store %arg7[%c8_129, %c0_130], %129 {strides = array<i32>} : memref<36x256xf32, #tpu.memory_space<vmem>>, vector<4x256xf32>,
    %c1_i32_131 = arith.constant 1 : i32
    %131 = tpu.dynamic_rotate %124 by %c1_i32_131 dim 1 : vector<4x256xf32>, i32 -> vector<4x256xf32>
    %c12_132 = arith.constant 12 : index
    %c0_133 = arith.constant 0 : index
    %132 = vector.load %arg7[%c12_132, %c0_133] : memref<36x256xf32, #tpu.memory_space<vmem>>, vector<4x256xf32>
    tpu.vector_store %arg7[%c12_132, %c0_133], %131 {strides = array<i32>} : memref<36x256xf32, #tpu.memory_space<vmem>>, vector<4x256xf32>,
    %c16_134 = arith.constant 16 : index
    %c0_135 = arith.constant 0 : index
    %133 = vector.load %arg7[%c16_134, %c0_135] : memref<36x256xf32, #tpu.memory_space<vmem>>, vector<4x256xf32>
    tpu.vector_store %arg7[%c16_134, %c0_135], %124 {strides = array<i32>} : memref<36x256xf32, #tpu.memory_space<vmem>>, vector<4x256xf32>,
    %c255_i32_136 = arith.constant 255 : i32
    %134 = tpu.dynamic_rotate %124 by %c255_i32_136 dim 1 : vector<4x256xf32>, i32 -> vector<4x256xf32>
    %c20_137 = arith.constant 20 : index
    %c0_138 = arith.constant 0 : index
    %135 = vector.load %arg7[%c20_137, %c0_138] : memref<36x256xf32, #tpu.memory_space<vmem>>, vector<4x256xf32>
    tpu.vector_store %arg7[%c20_137, %c0_138], %134 {strides = array<i32>} : memref<36x256xf32, #tpu.memory_space<vmem>>, vector<4x256xf32>,
    %c241_i32_139 = arith.constant 241 : i32
    %136 = tpu.dynamic_rotate %124 by %c241_i32_139 dim 1 : vector<4x256xf32>, i32 -> vector<4x256xf32>
    %c24_140 = arith.constant 24 : index
    %c0_141 = arith.constant 0 : index
    %137 = vector.load %arg7[%c24_140, %c0_141] : memref<36x256xf32, #tpu.memory_space<vmem>>, vector<4x256xf32>
    tpu.vector_store %arg7[%c24_140, %c0_141], %136 {strides = array<i32>} : memref<36x256xf32, #tpu.memory_space<vmem>>, vector<4x256xf32>,
    %c240_i32_142 = arith.constant 240 : i32
    %138 = tpu.dynamic_rotate %124 by %c240_i32_142 dim 1 : vector<4x256xf32>, i32 -> vector<4x256xf32>
    %c28_143 = arith.constant 28 : index
    %c0_144 = arith.constant 0 : index
    %139 = vector.load %arg7[%c28_143, %c0_144] : memref<36x256xf32, #tpu.memory_space<vmem>>, vector<4x256xf32>
    tpu.vector_store %arg7[%c28_143, %c0_144], %138 {strides = array<i32>} : memref<36x256xf32, #tpu.memory_space<vmem>>, vector<4x256xf32>,
    %c239_i32_145 = arith.constant 239 : i32
    %140 = tpu.dynamic_rotate %124 by %c239_i32_145 dim 1 : vector<4x256xf32>, i32 -> vector<4x256xf32>
    %c32_146 = arith.constant 32 : index
    %c0_147 = arith.constant 0 : index
    %141 = vector.load %arg7[%c32_146, %c0_147] : memref<36x256xf32, #tpu.memory_space<vmem>>, vector<4x256xf32>
    tpu.vector_store %arg7[%c32_146, %c0_147], %140 {strides = array<i32>} : memref<36x256xf32, #tpu.memory_space<vmem>>, vector<4x256xf32>,
    %c0_148 = arith.constant 0 : index
    %c0_149 = arith.constant 0 : index
    %142 = vector.load %arg7[%c0_148, %c0_149] : memref<36x256xf32, #tpu.memory_space<vmem>>, vector<36x256xf32>
    %143 = arith.mulf %142, %2 : vector<36x256xf32>
    %cst_150 = arith.constant dense<0.000000e+00> : vector<4x256xf32>
    %144 = tpu.matmul %0, %143, %cst_150 {dimension_numbers = #tpu.dot_dimension_numbers<[1], [0], [0], [1], [0, 0, 1, 1], [], []>} : vector<4x36xf32>, vector<36x256xf32>, vector<4x256xf32> -> vector<4x256xf32>
    %145 = arith.mulf %144, %144 : vector<4x256xf32>
    %146 = vector.shape_cast %145 : vector<4x256xf32> to vector<1x4x256xf32>
    %cst_151 = arith.constant dense<0.000000e+00> : vector<1xf32>
    %147 = vector.multi_reduction <add>, %146, %cst_151 [1, 2] : vector<1x4x256xf32> to vector<1xf32>
    %148 = vector.shape_cast %147 : vector<1xf32> to vector<1x1x1xf32>
    %149 = vector.extract %148[0, 0, 0] : f32 from vector<1x1x1xf32>
    %150 = math.sqrt %149 : f32
    %cst_152 = arith.constant 9.99999996E-13 : f32
    %151 = arith.addf %150, %cst_152 : f32
    %cst_153 = arith.constant 1.000000e+00 : f32
    %152 = arith.divf %cst_153, %151 : f32
    %153 = vector.broadcast %152 : f32 to vector<4x256xf32>
    %154 = arith.mulf %144, %153 : vector<4x256xf32>
    %c17_i32_154 = arith.constant 17 : i32
    %155 = tpu.dynamic_rotate %154 by %c17_i32_154 dim 1 : vector<4x256xf32>, i32 -> vector<4x256xf32>
    %c0_155 = arith.constant 0 : index
    %c0_156 = arith.constant 0 : index
    %156 = vector.load %arg8[%c0_155, %c0_156] : memref<36x256xf32, #tpu.memory_space<vmem>>, vector<4x256xf32>
    tpu.vector_store %arg8[%c0_155, %c0_156], %155 {strides = array<i32>} : memref<36x256xf32, #tpu.memory_space<vmem>>, vector<4x256xf32>,
    %c16_i32_157 = arith.constant 16 : i32
    %157 = tpu.dynamic_rotate %154 by %c16_i32_157 dim 1 : vector<4x256xf32>, i32 -> vector<4x256xf32>
    %c4_158 = arith.constant 4 : index
    %c0_159 = arith.constant 0 : index
    %158 = vector.load %arg8[%c4_158, %c0_159] : memref<36x256xf32, #tpu.memory_space<vmem>>, vector<4x256xf32>
    tpu.vector_store %arg8[%c4_158, %c0_159], %157 {strides = array<i32>} : memref<36x256xf32, #tpu.memory_space<vmem>>, vector<4x256xf32>,
    %c15_i32_160 = arith.constant 15 : i32
    %159 = tpu.dynamic_rotate %154 by %c15_i32_160 dim 1 : vector<4x256xf32>, i32 -> vector<4x256xf32>
    %c8_161 = arith.constant 8 : index
    %c0_162 = arith.constant 0 : index
    %160 = vector.load %arg8[%c8_161, %c0_162] : memref<36x256xf32, #tpu.memory_space<vmem>>, vector<4x256xf32>
    tpu.vector_store %arg8[%c8_161, %c0_162], %159 {strides = array<i32>} : memref<36x256xf32, #tpu.memory_space<vmem>>, vector<4x256xf32>,
    %c1_i32_163 = arith.constant 1 : i32
    %161 = tpu.dynamic_rotate %154 by %c1_i32_163 dim 1 : vector<4x256xf32>, i32 -> vector<4x256xf32>
    %c12_164 = arith.constant 12 : index
    %c0_165 = arith.constant 0 : index
    %162 = vector.load %arg8[%c12_164, %c0_165] : memref<36x256xf32, #tpu.memory_space<vmem>>, vector<4x256xf32>
    tpu.vector_store %arg8[%c12_164, %c0_165], %161 {strides = array<i32>} : memref<36x256xf32, #tpu.memory_space<vmem>>, vector<4x256xf32>,
    %c16_166 = arith.constant 16 : index
    %c0_167 = arith.constant 0 : index
    %163 = vector.load %arg8[%c16_166, %c0_167] : memref<36x256xf32, #tpu.memory_space<vmem>>, vector<4x256xf32>
    tpu.vector_store %arg8[%c16_166, %c0_167], %154 {strides = array<i32>} : memref<36x256xf32, #tpu.memory_space<vmem>>, vector<4x256xf32>,
    %c255_i32_168 = arith.constant 255 : i32
    %164 = tpu.dynamic_rotate %154 by %c255_i32_168 dim 1 : vector<4x256xf32>, i32 -> vector<4x256xf32>
    %c20_169 = arith.constant 20 : index
    %c0_170 = arith.constant 0 : index
    %165 = vector.load %arg8[%c20_169, %c0_170] : memref<36x256xf32, #tpu.memory_space<vmem>>, vector<4x256xf32>
    tpu.vector_store %arg8[%c20_169, %c0_170], %164 {strides = array<i32>} : memref<36x256xf32, #tpu.memory_space<vmem>>, vector<4x256xf32>,
    %c241_i32_171 = arith.constant 241 : i32
    %166 = tpu.dynamic_rotate %154 by %c241_i32_171 dim 1 : vector<4x256xf32>, i32 -> vector<4x256xf32>
    %c24_172 = arith.constant 24 : index
    %c0_173 = arith.constant 0 : index
    %167 = vector.load %arg8[%c24_172, %c0_173] : memref<36x256xf32, #tpu.memory_space<vmem>>, vector<4x256xf32>
    tpu.vector_store %arg8[%c24_172, %c0_173], %166 {strides = array<i32>} : memref<36x256xf32, #tpu.memory_space<vmem>>, vector<4x256xf32>,
    %c240_i32_174 = arith.constant 240 : i32
    %168 = tpu.dynamic_rotate %154 by %c240_i32_174 dim 1 : vector<4x256xf32>, i32 -> vector<4x256xf32>
    %c28_175 = arith.constant 28 : index
    %c0_176 = arith.constant 0 : index
    %169 = vector.load %arg8[%c28_175, %c0_176] : memref<36x256xf32, #tpu.memory_space<vmem>>, vector<4x256xf32>
    tpu.vector_store %arg8[%c28_175, %c0_176], %168 {strides = array<i32>} : memref<36x256xf32, #tpu.memory_space<vmem>>, vector<4x256xf32>,
    %c239_i32_177 = arith.constant 239 : i32
    %170 = tpu.dynamic_rotate %154 by %c239_i32_177 dim 1 : vector<4x256xf32>, i32 -> vector<4x256xf32>
    %c32_178 = arith.constant 32 : index
    %c0_179 = arith.constant 0 : index
    %171 = vector.load %arg8[%c32_178, %c0_179] : memref<36x256xf32, #tpu.memory_space<vmem>>, vector<4x256xf32>
    tpu.vector_store %arg8[%c32_178, %c0_179], %170 {strides = array<i32>} : memref<36x256xf32, #tpu.memory_space<vmem>>, vector<4x256xf32>,
    %c0_180 = arith.constant 0 : index
    %c0_181 = arith.constant 0 : index
    %172 = vector.load %arg8[%c0_180, %c0_181] : memref<36x256xf32, #tpu.memory_space<vmem>>, vector<36x256xf32>
    %173 = arith.mulf %172, %3 : vector<36x256xf32>
    %cst_182 = arith.constant dense<0.000000e+00> : vector<4x256xf32>
    %174 = tpu.matmul %1, %173, %cst_182 {dimension_numbers = #tpu.dot_dimension_numbers<[1], [0], [0], [1], [0, 0, 1, 1], [], []>} : vector<4x36xf32>, vector<36x256xf32>, vector<4x256xf32> -> vector<4x256xf32>
    %175 = arith.mulf %174, %174 : vector<4x256xf32>
    %176 = vector.shape_cast %175 : vector<4x256xf32> to vector<1x4x256xf32>
    %cst_183 = arith.constant dense<0.000000e+00> : vector<1xf32>
    %177 = vector.multi_reduction <add>, %176, %cst_183 [1, 2] : vector<1x4x256xf32> to vector<1xf32>
    %178 = vector.shape_cast %177 : vector<1xf32> to vector<1x1x1xf32>
    %179 = vector.extract %178[0, 0, 0] : f32 from vector<1x1x1xf32>
    %180 = math.sqrt %179 : f32
    %cst_184 = arith.constant 9.99999996E-13 : f32
    %181 = arith.addf %180, %cst_184 : f32
    %cst_185 = arith.constant 1.000000e+00 : f32
    %182 = arith.divf %cst_185, %181 : f32
    %183 = vector.broadcast %182 : f32 to vector<4x256xf32>
    %184 = arith.mulf %174, %183 : vector<4x256xf32>
    %185 = vector.broadcast %180 : f32 to vector<1x1xf32>
    %c0_186 = arith.constant 0 : index
    %c0_187 = arith.constant 0 : index
    %186 = vector.load %arg5[%c0_186, %c0_187] : memref<1x1xf32, #tpu.memory_space<vmem>>, vector<1x1xf32>
    tpu.vector_store %arg5[%c0_186, %c0_187], %185 {strides = array<i32>} : memref<1x1xf32, #tpu.memory_space<vmem>>, vector<1x1xf32>,
    %c0_188 = arith.constant 0 : index
    %c0_189 = arith.constant 0 : index
    %187 = vector.load %arg6[%c0_188, %c0_189] : memref<4x256xf32, #tpu.memory_space<vmem>>, vector<4x256xf32>
    tpu.vector_store %arg6[%c0_188, %c0_189], %184 {strides = array<i32>} : memref<4x256xf32, #tpu.memory_space<vmem>>, vector<4x256xf32>,
    return
  }
}

</mosaic_0001>

<llo_original>
// kernel: _conv_sigma.1
$region0: #{_conv_sigma.1}
  #allocation0 [shape = 'u32[]', space=smem, size = 0x4, offset = 0x4, fixed_abs, tag = 'smem constant byte address 0x4 - core index']
  #allocation1 [shape = 'u32[72,128]{1,0:T(1,128)}', space=vmem, size = 0x9000, scoped, tag = 'internal scratch']
  #allocation2 [shape = 'f32[36,256]{1,0:T(8,128)}', space=vmem, size = 0xa000, scoped, tag = 'scratch operand']
  #allocation3 [shape = 'f32[36,256]{1,0:T(8,128)}', space=vmem, size = 0xa000, scoped, tag = 'scratch operand']
  %s0 = inlined_call_operand.vmem [shape: f32[4,36], index: 0, kind: input, shape index: {}]
  %s1 = inlined_call_operand.vmem [shape: f32[4,36], index: 1, kind: input, shape index: {}]
  %s2 = inlined_call_operand.vmem [shape: f32[36,256], index: 2, kind: input, shape index: {}, may-alias: {2,3}]
  %s3 = inlined_call_operand.vmem [shape: f32[36,256], index: 3, kind: input, shape index: {}, may-alias: {2,3}]
  %s4 = inlined_call_operand.vmem [shape: f32[4,256], index: 4, kind: input, shape index: {}]
  %s5 = inlined_call_operand.hbm [shape: f32[1,1], index: 5, kind: output, shape index: {0}]
  %s6 = inlined_call_operand.hbm [shape: f32[4,256], index: 6, kind: output, shape index: {1}]
  %7 = xla_tuple %s5, %s6
  %s8 = sld [smem:[#allocation0]]
  $region38: #{_conv_sigma.1} parent=0
    _
  %s10 = ssub.s32 1, %s8
  %s11 = scalar_select 0, %s10, %s8
  $region1: #{_conv_sigma.1} parent=0
    #allocation4 [shape = 'u8[512]{0}', space=vmem, size = 0x400, scoped, tag = 'output window, operand 0, single buffered']
    #allocation5 [shape = 's32[1]{0}', space=sflag, size = 0x4, scoped, tag = 'scoped memory for _conv_sigma.1']
    #allocation6 [shape = 'u8[4096]{0}', space=vmem, size = 0x1000, scoped, tag = 'output window, operand 1, single buffered']
    #allocation7 [shape = 's32[1]{0}', space=sflag, size = 0x4, scoped, tag = 'scoped memory for _conv_sigma.1']
    %12 = vsyncpa [#allocation5], 0
    %13 = vsyncpa [#allocation7], 0
    // Predicated region
    $region2: #{_conv_sigma.1} parent=1 // pred_check
      _
    $region3: #{_conv_sigma.1} parent=1 // pred_check_branch
      %15 = sbr.rel (0) target = $region5
    $region4: #{_conv_sigma.1} parent=1 // pred_region
      _
    $region5: #{_conv_sigma.1} parent=1 // pred_fallthru
      _
    // Predicated region
    $region6: #{_conv_sigma.1} parent=1 // pred_check
      _
    $region7: #{_conv_sigma.1} parent=1 // pred_check_branch
      %17 = sbr.rel (0) target = $region9
    $region8: #{_conv_sigma.1} parent=1 // pred_region
      _
    $region9: #{_conv_sigma.1} parent=1 // pred_fallthru
      _
    // Predicated region
    $region10: #{_conv_sigma.1} parent=1 // pred_check
      _
    $region11: #{_conv_sigma.1} parent=1 // pred_check_branch
      %19 = sbr.rel (0) target = $region13
    $region12: #{_conv_sigma.1} parent=1 // pred_region
      _
    $region13: #{_conv_sigma.1} parent=1 // pred_fallthru
      _
    // Predicated region
    $region14: #{_conv_sigma.1} parent=1 // pred_check
      _
    $region15: #{_conv_sigma.1} parent=1 // pred_check_branch
      %21 = sbr.rel (0) target = $region17
    $region16: #{_conv_sigma.1} parent=1 // pred_region
      _
    $region17: #{_conv_sigma.1} parent=1 // pred_fallthru
      _
    // Predicated region
    $region18: #{_conv_sigma.1} parent=1 // pred_check
      _
    $region19: #{_conv_sigma.1} parent=1 // pred_check_branch
      %23 = sbr.rel (0) target = $region21
    $region20: #{_conv_sigma.1} parent=1 // pred_region
      _
    $region21: #{_conv_sigma.1} parent=1 // pred_fallthru
      _
    %v24 = vld [vmem:[%s0] sm:$0xf]
    %v25 = vld [vmem:[%s1] sm:$0xf]
    %v26 = vld [vmem:[%s2] sm:$0xff]
    %v27 = vld [vmem:[%s2 + $0x8] sm:$0xff]
    %v28 = vld [vmem:[%s2 + $0x10] sm:$0xff]
    %v29 = vld [vmem:[%s2 + $0x18] sm:$0xff]
    %v30 = vld [vmem:[%s2 + $0x20] sm:$0xff]
    %v31 = vld [vmem:[%s2 + $0x28] sm:$0xff]
    %v32 = vld [vmem:[%s2 + $0x30] sm:$0xff]
    %v33 = vld [vmem:[%s2 + $0x38] sm:$0xff]
    %v34 = vld [vmem:[%s2 + $0x40] sm:$0xf]
    %v35 = vld [vmem:[%s2 + $0x48] sm:$0xf]
    %v36 = vld [vmem:[%s3] sm:$0xff]
    %v37 = vld [vmem:[%s3 + $0x8] sm:$0xff]
    %v38 = vld [vmem:[%s3 + $0x10] sm:$0xff]
    %v39 = vld [vmem:[%s3 + $0x18] sm:$0xff]
    %v40 = vld [vmem:[%s3 + $0x20] sm:$0xff]
    %v41 = vld [vmem:[%s3 + $0x28] sm:$0xff]
    %v42 = vld [vmem:[%s3 + $0x30] sm:$0xff]
    %v43 = vld [vmem:[%s3 + $0x38] sm:$0xff]
    %v44 = vld [vmem:[%s3 + $0x40] sm:$0xf]
    %v45 = vld [vmem:[%s3 + $0x48] sm:$0xf]
    %v46 = vld [vmem:[%s4] sm:$0xff]
    %48 = vst [vmem:[#allocation1] ss:$2 sm:$0xff] %v46
    %v49 = vld.sshfl [vmem:[#allocation1] sm:$0xff pattern:$0x75316420]
    %v50 = vld.sshfl [vmem:[#allocation1 + $0x8] sm:$0xff pattern:$0x75316420]
    %53 = vrot.lane.b32.xlu0 %v49, 17
    %v54 = vpop.permute.xlu0 %53
    %55 = vrot.lane.b32.xlu0 %v50, 17
    %v56 = vpop.permute.xlu0 %55
    %v57 = vlaneseq
    %v58 = vand.u32 %v57, 127
    %vm59 = vcmp.lt.s32.totalorder %v58, 17
    %v60 = vsel %vm59, %v54, %v56
    %v61 = vsel %vm59, %v56, %v54
    %62 = vst [vmem:[#allocation2] sm:$0xf] %v61
    %63 = vst [vmem:[#allocation2 + $0x8] sm:$0xf] %v60
    %64 = vst [vmem:[#allocation1] ss:$2 sm:$0xff] %v46
    %v65 = vld.sshfl [vmem:[#allocation1] sm:$0xff pattern:$0x75316420]
    %v66 = vld.sshfl [vmem:[#allocation1 + $0x8] sm:$0xff pattern:$0x75316420]
    %69 = vrot.lane.b32.xlu0 %v65, 16
    %v70 = vpop.permute.xlu0 %69
    %71 = vrot.lane.b32.xlu0 %v66, 16
    %v72 = vpop.permute.xlu0 %71
    %vm73 = vcmp.lt.s32.totalorder %v58, 16
    %v74 = vsel %vm73, %v70, %v72
    %v75 = vsel %vm73, %v72, %v70
    %v78 = vrot.slane %v75, 4
    %v79 = vrot.slane %v74, 4
    %82 = vst [vmem:[#allocation2] sm:$0xf0] %v78
    %83 = vst [vmem:[#allocation2 + $0x8] sm:$0xf0] %v79
    %84 = vst [vmem:[#allocation1] ss:$2 sm:$0xff] %v46
    %v85 = vld.sshfl [vmem:[#allocation1] sm:$0xff pattern:$0x75316420]
    %v86 = vld.sshfl [vmem:[#allocation1 + $0x8] sm:$0xff pattern:$0x75316420]
    %89 = vrot.lane.b32.xlu0 %v85, 15
    %v90 = vpop.permute.xlu0 %89
    %91 = vrot.lane.b32.xlu0 %v86, 15
    %v92 = vpop.permute.xlu0 %91
    %vm93 = vcmp.lt.s32.totalorder %v58, 15
    %v94 = vsel %vm93, %v90, %v92
    %v95 = vsel %vm93, %v92, %v90
    %96 = vst [vmem:[#allocation2 + $0x10] sm:$0xf] %v95
    %97 = vst [vmem:[#allocation2 + $0x18] sm:$0xf] %v94
    %98 = vst [vmem:[#allocation1] ss:$2 sm:$0xff] %v46
    %v99 = vld.sshfl [vmem:[#allocation1] sm:$0xff pattern:$0x75316420]
    %v100 = vld.sshfl [vmem:[#allocation1 + $0x8] sm:$0xff pattern:$0x75316420]
    %103 = vrot.lane.b32.xlu0 %v99, 1
    %v104 = vpop.permute.xlu0 %103
    %105 = vrot.lane.b32.xlu0 %v100, 1
    %v106 = vpop.permute.xlu0 %105
    %vm107 = vcmp.lt.s32.totalorder %v58, 1
    %v108 = vsel %vm107, %v104, %v106
    %v109 = vsel %vm107, %v106, %v104
    %v112 = vrot.slane %v109, 4
    %v113 = vrot.slane %v108, 4
    %116 = vst [vmem:[#allocation2 + $0x10] sm:$0xf0] %v112
    %117 = vst [vmem:[#allocation2 + $0x18] sm:$0xf0] %v113
    %118 = vst [vmem:[#allocation1] ss:$2 sm:$0xff] %v46
    %v119 = vld.sshfl [vmem:[#allocation1] sm:$0xff pattern:$0x75316420]
    %v120 = vld.sshfl [vmem:[#allocation1 + $0x8] sm:$0xff pattern:$0x75316420]
    %123 = vst [vmem:[#allocation2 + $0x20] sm:$0xf] %v119
    %124 = vst [vmem:[#allocation2 + $0x28] sm:$0xf] %v120
    %125 = vst [vmem:[#allocation1] ss:$2 sm:$0xff] %v46
    %v126 = vld.sshfl [vmem:[#allocation1] sm:$0xff pattern:$0x75316420]
    %v127 = vld.sshfl [vmem:[#allocation1 + $0x8] sm:$0xff pattern:$0x75316420]
    %130 = vrot.lane.b32.xlu0 %v126, 127
    %v131 = vpop.permute.xlu0 %130
    %132 = vrot.lane.b32.xlu0 %v127, 127
    %v133 = vpop.permute.xlu0 %132
    %vm134 = vcmp.lt.s32.totalorder %v58, 127
    %v135 = vsel %vm134, %v131, %v133
    %v136 = vsel %vm134, %v133, %v131
    %v139 = vrot.slane %v135, 4
    %v140 = vrot.slane %v136, 4
    %143 = vst [vmem:[#allocation2 + $0x20] sm:$0xf0] %v139
    %144 = vst [vmem:[#allocation2 + $0x28] sm:$0xf0] %v140
    %145 = vst [vmem:[#allocation1] ss:$2 sm:$0xff] %v46
    %v146 = vld.sshfl [vmem:[#allocation1] sm:$0xff pattern:$0x75316420]
    %v147 = vld.sshfl [vmem:[#allocation1 + $0x8] sm:$0xff pattern:$0x75316420]
    %150 = vrot.lane.b32.xlu0 %v146, 113
    %v151 = vpop.permute.xlu0 %150
    %152 = vrot.lane.b32.xlu0 %v147, 113
    %v153 = vpop.permute.xlu0 %152
    %vm154 = vcmp.lt.s32.totalorder %v58, 113
    %v155 = vsel %vm154, %v151, %v153
    %v156 = vsel %vm154, %v153, %v151
    %157 = vst [vmem:[#allocation2 + $0x30] sm:$0xf] %v155
    %158 = vst [vmem:[#allocation2 + $0x38] sm:$0xf] %v156
    %159 = vst [vmem:[#allocation1] ss:$2 sm:$0xff] %v46
    %v160 = vld.sshfl [vmem:[#allocation1] sm:$0xff pattern:$0x75316420]
    %v161 = vld.sshfl [vmem:[#allocation1 + $0x8] sm:$0xff pattern:$0x75316420]
    %164 = vrot.lane.b32.xlu0 %v160, 112
    %v165 = vpop.permute.xlu0 %164
    %166 = vrot.lane.b32.xlu0 %v161, 112
    %v167 = vpop.permute.xlu0 %166
    %vm168 = vcmp.lt.s32.totalorder %v58, 112
    %v169 = vsel %vm168, %v165, %v167
    %v170 = vsel %vm168, %v167, %v165
    %v173 = vrot.slane %v169, 4
    %v174 = vrot.slane %v170, 4
    %177 = vst [vmem:[#allocation2 + $0x30] sm:$0xf0] %v173
    %178 = vst [vmem:[#allocation2 + $0x38] sm:$0xf0] %v174
    %179 = vst [vmem:[#allocation1] ss:$2 sm:$0xff] %v46
    %v180 = vld.sshfl [vmem:[#allocation1] sm:$0xff pattern:$0x75316420]
    %v181 = vld.sshfl [vmem:[#allocation1 + $0x8] sm:$0xff pattern:$0x75316420]
    %184 = vrot.lane.b32.xlu0 %v180, 111
    %v185 = vpop.permute.xlu0 %184
    %186 = vrot.lane.b32.xlu0 %v181, 111
    %v187 = vpop.permute.xlu0 %186
    %vm188 = vcmp.lt.s32.totalorder %v58, 111
    %v189 = vsel %vm188, %v185, %v187
    %v190 = vsel %vm188, %v187, %v185
    %191 = vst [vmem:[#allocation2 + $0x40] sm:$0xf] %v189
    %192 = vst [vmem:[#allocation2 + $0x48] sm:$0xf] %v190
    %v193 = vld [vmem:[#allocation2] sm:$0xff]
    %v194 = vld [vmem:[#allocation2 + $0x8] sm:$0xff]
    %v195 = vld [vmem:[#allocation2 + $0x10] sm:$0xff]
    %v196 = vld [vmem:[#allocation2 + $0x18] sm:$0xff]
    %v197 = vld [vmem:[#allocation2 + $0x20] sm:$0xff]
    %v198 = vld [vmem:[#allocation2 + $0x28] sm:$0xff]
    %v199 = vld [vmem:[#allocation2 + $0x30] sm:$0xff]
    %v200 = vld [vmem:[#allocation2 + $0x38] sm:$0xff]
    %v201 = vld [vmem:[#allocation2 + $0x40] sm:$0xf]
    %v202 = vld [vmem:[#allocation2 + $0x48] sm:$0xf]
    %v203 = vmul.f32 %v193, %v26
    %v204 = vmul.f32 %v194, %v27
    %v205 = vmul.f32 %v195, %v28
    %v206 = vmul.f32 %v196, %v29
    %v207 = vmul.f32 %v197, %v30
    %v208 = vmul.f32 %v198, %v31
    %v209 = vmul.f32 %v199, %v32
    %v210 = vmul.f32 %v200, %v33
    %v211 = vmul.f32 %v201, %v34
    %v212 = vmul.f32 %v202, %v35
    %vm213 = vcmask 293888
    %v215 = vsel %vm213, %v24, 0
    %vm217 = vcmask 1043456
    %v219 = vsel %vm217, %v211, 0
    %v222 = vsel %vm217, %v212, 0
    %224 = vmatpush.msra.mxu0 0.0
    %225 = vmatpush.msra.mxu0 0.0
    %226 = vmatpush.msra.mxu0 0.0
    %227 = vmatpush.msra.mxu0 0.0
    %228 = vmatpush.msra.mxu0 0.0
    %229 = vmatpush.msra.mxu0 0.0
    %230 = vmatpush.msra.mxu0 0.0
    %231 = vmatpush.msra.mxu0 0.0
    %232 = vmatpush.msra.mxu0 0.0
    %233 = vmatpush.msra.mxu0 0.0
    %234 = vmatpush.msra.mxu0 0.0
    %235 = vmatpush.msra.mxu0 %v219
    %236 = vmatpush.msra.mxu0 %v209
    %237 = vmatpush.msra.mxu0 %v207
    %238 = vmatpush.msra.mxu0 %v205
    %239 = vmatpush.msra.mxu0 %v203
    %240 = vmatmul.f32.gmra.mxu0 %v215
    %v241 = vpop.f32.mrf.mxu0
    %v242 = vadd.f32 0.0, %v241
    %243 = vdwg.mxu0
    %244 = vmatpush.msra.mxu0 0.0
    %245 = vmatpush.msra.mxu0 0.0
    %246 = vmatpush.msra.mxu0 0.0
    %247 = vmatpush.msra.mxu0 0.0
    %248 = vmatpush.msra.mxu0 0.0
    %249 = vmatpush.msra.mxu0 0.0
    %250 = vmatpush.msra.mxu0 0.0
    %251 = vmatpush.msra.mxu0 0.0
    %252 = vmatpush.msra.mxu0 0.0
    %253 = vmatpush.msra.mxu0 0.0
    %254 = vmatpush.msra.mxu0 0.0
    %255 = vmatpush.msra.mxu0 %v222
    %256 = vmatpush.msra.mxu0 %v210
    %257 = vmatpush.msra.mxu0 %v208
    %258 = vmatpush.msra.mxu0 %v206
    %259 = vmatpush.msra.mxu0 %v204
    %260 = vmatmul.f32.gmra.mxu0 %v215
    %v261 = vpop.f32.mrf.mxu0
    %v262 = vadd.f32 0.0, %v261
    %263 = vdwg.mxu0
    %v264 = vmul.f32 %v242, %v242
    %v265 = vmul.f32 %v262, %v262
    %v266 = vsel %vm217, %v264, 0.0
    %v267 = vsel %vm217, %v265, 0.0
    %v268 = vadd.f32 %v266, %v267
    %269 = vadd.xlane.f32.xlu0 %v268
    %v270 = vpop.xlane.xlu0 %269
    %v271 = vrot.slane %v270, 4
    %v272 = vadd.f32 %v270, %v271
    %v273 = vrot.slane %v272, 2
    %v274 = vadd.f32 %v272, %v273
    %v275 = vrot.slane %v274, 1
    %v276 = vadd.f32 %v274, %v275
    %s277 = vtos %v276
    %v278 = vstv %s277
    %v279 = vrsqrt.pop %v278
    %v280 = vmul.f32 %v279, %v278
    %v281 = vmul.f32 %v280, %v279
    %v282 = vmul.f32 0.5, %v281
    %v283 = vsub.f32 1.5, %v282
    %v284 = vmul.f32 %v279, %v283
    %v285 = vmul.f32 %v278, %v284
    %vm286 = vcmp.eq.f32.partialorder %v278, inf
    %v287 = vsel %vm286, %v278, %v285
    %vm288 = vcmp.eq.f32.partialorder %v278, 0.0
    %v289 = vand.u32 %v278, 2147483648
    %v290 = vsel %vm288, %v289, %v287
    %s291 = vtos %v290
    %s292 = sadd.f32 %s291, 1e-12
    %v293 = vstv %s292
    %v294 = vrcp.pop %v293
    %v295 = vmul.f32 %v293, %v294
    %v296 = vsub.f32 1.0, %v295
    %v297 = vmul.f32 %v294, %v296
    %v298 = vadd.f32 %v294, %v297
    %vm299 = vweird.f32 %v293
    %vm300 = vweird.f32 %v294
    %vm301 = vmor %vm299, %vm300
    %v302 = vsel %vm301, %v294, %v298
    %v303 = vand.u32 2147483647, %v293
    %vm304 = vcmp.eq.f32.partialorder %v303, 8.507059e+37
    %v305 = vand.u32 %v293, 2147483648
    %v306 = vor.u32 1.1754944e-38, %v305
    %v307 = vsel %vm304, %v306, %v302
    %s308 = vtos %v307
    %v309 = vstv %s308
    %v310 = vmul.f32 %v242, %v309
    %v311 = vmul.f32 %v262, %v309
    %312 = vrot.lane.b32.xlu0 %v310, 17
    %v313 = vpop.permute.xlu0 %312
    %314 = vrot.lane.b32.xlu0 %v311, 17
    %v315 = vpop.permute.xlu0 %314
    %v316 = vsel %vm59, %v313, %v315
    %v317 = vsel %vm59, %v315, %v313
    %318 = vst [vmem:[#allocation3] sm:$0xf] %v317
    %319 = vst [vmem:[#allocation3 + $0x8] sm:$0xf] %v316
    %320 = vrot.lane.b32.xlu0 %v310, 16
    %v321 = vpop.permute.xlu0 %320
    %322 = vrot.lane.b32.xlu0 %v311, 16
    %v323 = vpop.permute.xlu0 %322
    %v324 = vsel %vm73, %v321, %v323
    %v325 = vsel %vm73, %v323, %v321
    %v328 = vrot.slane %v325, 4
    %v329 = vrot.slane %v324, 4
    %332 = vst [vmem:[#allocation3] sm:$0xf0] %v328
    %333 = vst [vmem:[#allocation3 + $0x8] sm:$0xf0] %v329
    %334 = vrot.lane.b32.xlu0 %v310, 15
    %v335 = vpop.permute.xlu0 %334
    %336 = vrot.lane.b32.xlu0 %v311, 15
    %v337 = vpop.permute.xlu0 %336
    %v338 = vsel %vm93, %v335, %v337
    %v339 = vsel %vm93, %v337, %v335
    %340 = vst [vmem:[#allocation3 + $0x10] sm:$0xf] %v339
    %341 = vst [vmem:[#allocation3 + $0x18] sm:$0xf] %v338
    %342 = vrot.lane.b32.xlu0 %v310, 1
    %v343 = vpop.permute.xlu0 %342
    %344 = vrot.lane.b32.xlu0 %v311, 1
    %v345 = vpop.permute.xlu0 %344
    %v346 = vsel %vm107, %v343, %v345
    %v347 = vsel %vm107, %v345, %v343
    %v350 = vrot.slane %v347, 4
    %v351 = vrot.slane %v346, 4
    %354 = vst [vmem:[#allocation3 + $0x10] sm:$0xf0] %v350
    %355 = vst [vmem:[#allocation3 + $0x18] sm:$0xf0] %v351
    %356 = vst [vmem:[#allocation3 + $0x20] sm:$0xf] %v310
    %357 = vst [vmem:[#allocation3 + $0x28] sm:$0xf] %v311
    %358 = vrot.lane.b32.xlu0 %v310, 127
    %v359 = vpop.permute.xlu0 %358
    %360 = vrot.lane.b32.xlu0 %v311, 127
    %v361 = vpop.permute.xlu0 %360
    %v362 = vsel %vm134, %v359, %v361
    %v363 = vsel %vm134, %v361, %v359
    %v366 = vrot.slane %v362, 4
    %v367 = vrot.slane %v363, 4
    %370 = vst [vmem:[#allocation3 + $0x20] sm:$0xf0] %v366
    %371 = vst [vmem:[#allocation3 + $0x28] sm:$0xf0] %v367
    %372 = vrot.lane.b32.xlu0 %v310, 113
    %v373 = vpop.permute.xlu0 %372
    %374 = vrot.lane.b32.xlu0 %v311, 113
    %v375 = vpop.permute.xlu0 %374
    %v376 = vsel %vm154, %v373, %v375
    %v377 = vsel %vm154, %v375, %v373
    %378 = vst [vmem:[#allocation3 + $0x30] sm:$0xf] %v376
    %379 = vst [vmem:[#allocation3 + $0x38] sm:$0xf] %v377
    %380 = vrot.lane.b32.xlu0 %v310, 112
    %v381 = vpop.permute.xlu0 %380
    %382 = vrot.lane.b32.xlu0 %v311, 112
    %v383 = vpop.permute.xlu0 %382
    %v384 = vsel %vm168, %v381, %v383
    %v385 = vsel %vm168, %v383, %v381
    %v388 = vrot.slane %v384, 4
    %v389 = vrot.slane %v385, 4
    %392 = vst [vmem:[#allocation3 + $0x30] sm:$0xf0] %v388
    %393 = vst [vmem:[#allocation3 + $0x38] sm:$0xf0] %v389
    %394 = vrot.lane.b32.xlu0 %v310, 111
    %v395 = vpop.permute.xlu0 %394
    %396 = vrot.lane.b32.xlu0 %v311, 111
    %v397 = vpop.permute.xlu0 %396
    %v398 = vsel %vm188, %v395, %v397
    %v399 = vsel %vm188, %v397, %v395
    %400 = vst [vmem:[#allocation3 + $0x40] sm:$0xf] %v398
    %401 = vst [vmem:[#allocation3 + $0x48] sm:$0xf] %v399
    %v402 = vld [vmem:[#allocation3] sm:$0xff]
    %v403 = vld [vmem:[#allocation3 + $0x8] sm:$0xff]
    %v404 = vld [vmem:[#allocation3 + $0x10] sm:$0xff]
    %v405 = vld [vmem:[#allocation3 + $0x18] sm:$0xff]
    %v406 = vld [vmem:[#allocation3 + $0x20] sm:$0xff]
    %v407 = vld [vmem:[#allocation3 + $0x28] sm:$0xff]
    %v408 = vld [vmem:[#allocation3 + $0x30] sm:$0xff]
    %v409 = vld [vmem:[#allocation3 + $0x38] sm:$0xff]
    %v410 = vld [vmem:[#allocation3 + $0x40] sm:$0xf]
    %v411 = vld [vmem:[#allocation3 + $0x48] sm:$0xf]
    %v412 = vmul.f32 %v402, %v36
    %v413 = vmul.f32 %v403, %v37
    %v414 = vmul.f32 %v404, %v38
    %v415 = vmul.f32 %v405, %v39
    %v416 = vmul.f32 %v406, %v40
    %v417 = vmul.f32 %v407, %v41
    %v418 = vmul.f32 %v408, %v42
    %v419 = vmul.f32 %v409, %v43
    %v420 = vmul.f32 %v410, %v44
    %v421 = vmul.f32 %v411, %v45
    %v423 = vsel %vm213, %v25, 0
    %v426 = vsel %vm217, %v420, 0
    %v429 = vsel %vm217, %v421, 0
    %431 = vmatpush.msra.mxu0 0.0
    %432 = vmatpush.msra.mxu0 0.0
    %433 = vmatpush.msra.mxu0 0.0
    %434 = vmatpush.msra.mxu0 0.0
    %435 = vmatpush.msra.mxu0 0.0
    %436 = vmatpush.msra.mxu0 0.0
    %437 = vmatpush.msra.mxu0 0.0
    %438 = vmatpush.msra.mxu0 0.0
    %439 = vmatpush.msra.mxu0 0.0
    %440 = vmatpush.msra.mxu0 0.0
    %441 = vmatpush.msra.mxu0 0.0
    %442 = vmatpush.msra.mxu0 %v426
    %443 = vmatpush.msra.mxu0 %v418
    %444 = vmatpush.msra.mxu0 %v416
    %445 = vmatpush.msra.mxu0 %v414
    %446 = vmatpush.msra.mxu0 %v412
    %447 = vmatmul.f32.gmra.mxu0 %v423
    %v448 = vpop.f32.mrf.mxu0
    %v449 = vadd.f32 0.0, %v448
    %450 = vdwg.mxu0
    %451 = vmatpush.msra.mxu0 0.0
    %452 = vmatpush.msra.mxu0 0.0
    %453 = vmatpush.msra.mxu0 0.0
    %454 = vmatpush.msra.mxu0 0.0
    %455 = vmatpush.msra.mxu0 0.0
    %456 = vmatpush.msra.mxu0 0.0
    %457 = vmatpush.msra.mxu0 0.0
    %458 = vmatpush.msra.mxu0 0.0
    %459 = vmatpush.msra.mxu0 0.0
    %460 = vmatpush.msra.mxu0 0.0
    %461 = vmatpush.msra.mxu0 0.0
    %462 = vmatpush.msra.mxu0 %v429
    %463 = vmatpush.msra.mxu0 %v419
    %464 = vmatpush.msra.mxu0 %v417
    %465 = vmatpush.msra.mxu0 %v415
    %466 = vmatpush.msra.mxu0 %v413
    %467 = vmatmul.f32.gmra.mxu0 %v423
    %v468 = vpop.f32.mrf.mxu0
    %v469 = vadd.f32 0.0, %v468
    %470 = vdwg.mxu0
    %v471 = vmul.f32 %v449, %v449
    %v472 = vmul.f32 %v469, %v469
    %v473 = vsel %vm217, %v471, 0.0
    %v474 = vsel %vm217, %v472, 0.0
    %v475 = vadd.f32 %v473, %v474
    %476 = vadd.xlane.f32.xlu0 %v475
    %v477 = vpop.xlane.xlu0 %476
    %v478 = vrot.slane %v477, 4
    %v479 = vadd.f32 %v477, %v478
    %v480 = vrot.slane %v479, 2
    %v481 = vadd.f32 %v479, %v480
    %v482 = vrot.slane %v481, 1
    %v483 = vadd.f32 %v481, %v482
    %s484 = vtos %v483
    %v485 = vstv %s484
    %v486 = vrsqrt.pop %v485
    %v487 = vmul.f32 %v486, %v485
    %v488 = vmul.f32 %v487, %v486
    %v489 = vmul.f32 0.5, %v488
    %v490 = vsub.f32 1.5, %v489
    %v491 = vmul.f32 %v486, %v490
    %v492 = vmul.f32 %v485, %v491
    %vm493 = vcmp.eq.f32.partialorder %v485, inf
    %v494 = vsel %vm493, %v485, %v492
    %vm495 = vcmp.eq.f32.partialorder %v485, 0.0
    %v496 = vand.u32 %v485, 2147483648
    %v497 = vsel %vm495, %v496, %v494
    %s498 = vtos %v497
    %s499 = sadd.f32 %s498, 1e-12
    %v500 = vstv %s499
    %v501 = vrcp.pop %v500
    %v502 = vmul.f32 %v500, %v501
    %v503 = vsub.f32 1.0, %v502
    %v504 = vmul.f32 %v501, %v503
    %v505 = vadd.f32 %v501, %v504
    %vm506 = vweird.f32 %v500
    %vm507 = vweird.f32 %v501
    %vm508 = vmor %vm506, %vm507
    %v509 = vsel %vm508, %v501, %v505
    %v510 = vand.u32 2147483647, %v500
    %vm511 = vcmp.eq.f32.partialorder %v510, 8.507059e+37
    %v512 = vand.u32 %v500, 2147483648
    %v513 = vor.u32 1.1754944e-38, %v512
    %v514 = vsel %vm511, %v513, %v509
    %s515 = vtos %v514
    %v516 = vstv %s515
    %v517 = vmul.f32 %v449, %v516
    %v518 = vmul.f32 %v469, %v516
    %519 = vrot.lane.b32.xlu0 %v517, 17
    %v520 = vpop.permute.xlu0 %519
    %521 = vrot.lane.b32.xlu0 %v518, 17
    %v522 = vpop.permute.xlu0 %521
    %v523 = vsel %vm59, %v520, %v522
    %v524 = vsel %vm59, %v522, %v520
    %525 = vst [vmem:[#allocation2] sm:$0xf] %v524
    %526 = vst [vmem:[#allocation2 + $0x8] sm:$0xf] %v523
    %527 = vrot.lane.b32.xlu0 %v517, 16
    %v528 = vpop.permute.xlu0 %527
    %529 = vrot.lane.b32.xlu0 %v518, 16
    %v530 = vpop.permute.xlu0 %529
    %v531 = vsel %vm73, %v528, %v530
    %v532 = vsel %vm73, %v530, %v528
    %v535 = vrot.slane %v532, 4
    %v536 = vrot.slane %v531, 4
    %539 = vst [vmem:[#allocation2] sm:$0xf0] %v535
    %540 = vst [vmem:[#allocation2 + $0x8] sm:$0xf0] %v536
    %541 = vrot.lane.b32.xlu0 %v517, 15
    %v542 = vpop.permute.xlu0 %541
    %543 = vrot.lane.b32.xlu0 %v518, 15
    %v544 = vpop.permute.xlu0 %543
    %v545 = vsel %vm93, %v542, %v544
    %v546 = vsel %vm93, %v544, %v542
    %547 = vst [vmem:[#allocation2 + $0x10] sm:$0xf] %v546
    %548 = vst [vmem:[#allocation2 + $0x18] sm:$0xf] %v545
    %549 = vrot.lane.b32.xlu0 %v517, 1
    %v550 = vpop.permute.xlu0 %549
    %551 = vrot.lane.b32.xlu0 %v518, 1
    %v552 = vpop.permute.xlu0 %551
    %v553 = vsel %vm107, %v550, %v552
    %v554 = vsel %vm107, %v552, %v550
    %v557 = vrot.slane %v554, 4
    %v558 = vrot.slane %v553, 4
    %561 = vst [vmem:[#allocation2 + $0x10] sm:$0xf0] %v557
    %562 = vst [vmem:[#allocation2 + $0x18] sm:$0xf0] %v558
    %563 = vst [vmem:[#allocation2 + $0x20] sm:$0xf] %v517
    %564 = vst [vmem:[#allocation2 + $0x28] sm:$0xf] %v518
    %565 = vrot.lane.b32.xlu0 %v517, 127
    %v566 = vpop.permute.xlu0 %565
    %567 = vrot.lane.b32.xlu0 %v518, 127
    %v568 = vpop.permute.xlu0 %567
    %v569 = vsel %vm134, %v566, %v568
    %v570 = vsel %vm134, %v568, %v566
    %v573 = vrot.slane %v569, 4
    %v574 = vrot.slane %v570, 4
    %577 = vst [vmem:[#allocation2 + $0x20] sm:$0xf0] %v573
    %578 = vst [vmem:[#allocation2 + $0x28] sm:$0xf0] %v574
    %579 = vrot.lane.b32.xlu0 %v517, 113
    %v580 = vpop.permute.xlu0 %579
    %581 = vrot.lane.b32.xlu0 %v518, 113
    %v582 = vpop.permute.xlu0 %581
    %v583 = vsel %vm154, %v580, %v582
    %v584 = vsel %vm154, %v582, %v580
    %585 = vst [vmem:[#allocation2 + $0x30] sm:$0xf] %v583
    %586 = vst [vmem:[#allocation2 + $0x38] sm:$0xf] %v584
    %587 = vrot.lane.b32.xlu0 %v517, 112
    %v588 = vpop.permute.xlu0 %587
    %589 = vrot.lane.b32.xlu0 %v518, 112
    %v590 = vpop.permute.xlu0 %589
    %v591 = vsel %vm168, %v588, %v590
    %v592 = vsel %vm168, %v590, %v588
    %v595 = vrot.slane %v591, 4
    %v596 = vrot.slane %v592, 4
    %599 = vst [vmem:[#allocation2 + $0x30] sm:$0xf0] %v595
    %600 = vst [vmem:[#allocation2 + $0x38] sm:$0xf0] %v596
    %601 = vrot.lane.b32.xlu0 %v517, 111
    %v602 = vpop.permute.xlu0 %601
    %603 = vrot.lane.b32.xlu0 %v518, 111
    %v604 = vpop.permute.xlu0 %603
    %v605 = vsel %vm188, %v602, %v604
    %v606 = vsel %vm188, %v604, %v602
    %607 = vst [vmem:[#allocation2 + $0x40] sm:$0xf] %v605
    %608 = vst [vmem:[#allocation2 + $0x48] sm:$0xf] %v606
    %v609 = vld [vmem:[#allocation2] sm:$0xff]
    %v610 = vld [vmem:[#allocation2 + $0x8] sm:$0xff]
    %v611 = vld [vmem:[#allocation2 + $0x10] sm:$0xff]
    %v612 = vld [vmem:[#allocation2 + $0x18] sm:$0xff]
    %v613 = vld [vmem:[#allocation2 + $0x20] sm:$0xff]
    %v614 = vld [vmem:[#allocation2 + $0x28] sm:$0xff]
    %v615 = vld [vmem:[#allocation2 + $0x30] sm:$0xff]
    %v616 = vld [vmem:[#allocation2 + $0x38] sm:$0xff]
    %v617 = vld [vmem:[#allocation2 + $0x40] sm:$0xf]
    %v618 = vld [vmem:[#allocation2 + $0x48] sm:$0xf]
    %v619 = vmul.f32 %v609, %v26
    %v620 = vmul.f32 %v610, %v27
    %v621 = vmul.f32 %v611, %v28
    %v622 = vmul.f32 %v612, %v29
    %v623 = vmul.f32 %v613, %v30
    %v624 = vmul.f32 %v614, %v31
    %v625 = vmul.f32 %v615, %v32
    %v626 = vmul.f32 %v616, %v33
    %v627 = vmul.f32 %v617, %v34
    %v628 = vmul.f32 %v618, %v35
    %v630 = vsel %vm217, %v627, 0
    %v633 = vsel %vm217, %v628, 0
    %635 = vmatpush.msra.mxu0 0.0
    %636 = vmatpush.msra.mxu0 0.0
    %637 = vmatpush.msra.mxu0 0.0
    %638 = vmatpush.msra.mxu0 0.0
    %639 = vmatpush.msra.mxu0 0.0
    %640 = vmatpush.msra.mxu0 0.0
    %641 = vmatpush.msra.mxu0 0.0
    %642 = vmatpush.msra.mxu0 0.0
    %643 = vmatpush.msra.mxu0 0.0
    %644 = vmatpush.msra.mxu0 0.0
    %645 = vmatpush.msra.mxu0 0.0
    %646 = vmatpush.msra.mxu0 %v630
    %647 = vmatpush.msra.mxu0 %v625
    %648 = vmatpush.msra.mxu0 %v623
    %649 = vmatpush.msra.mxu0 %v621
    %650 = vmatpush.msra.mxu0 %v619
    %651 = vmatmul.f32.gmra.mxu0 %v215
    %v652 = vpop.f32.mrf.mxu0
    %v653 = vadd.f32 0.0, %v652
    %654 = vdwg.mxu0
    %655 = vmatpush.msra.mxu0 0.0
    %656 = vmatpush.msra.mxu0 0.0
    %657 = vmatpush.msra.mxu0 0.0
    %658 = vmatpush.msra.mxu0 0.0
    %659 = vmatpush.msra.mxu0 0.0
    %660 = vmatpush.msra.mxu0 0.0
    %661 = vmatpush.msra.mxu0 0.0
    %662 = vmatpush.msra.mxu0 0.0
    %663 = vmatpush.msra.mxu0 0.0
    %664 = vmatpush.msra.mxu0 0.0
    %665 = vmatpush.msra.mxu0 0.0
    %666 = vmatpush.msra.mxu0 %v633
    %667 = vmatpush.msra.mxu0 %v626
    %668 = vmatpush.msra.mxu0 %v624
    %669 = vmatpush.msra.mxu0 %v622
    %670 = vmatpush.msra.mxu0 %v620
    %671 = vmatmul.f32.gmra.mxu0 %v215
    %v672 = vpop.f32.mrf.mxu0
    %v673 = vadd.f32 0.0, %v672
    %674 = vdwg.mxu0
    %v675 = vmul.f32 %v653, %v653
    %v676 = vmul.f32 %v673, %v673
    %v677 = vsel %vm217, %v675, 0.0
    %v678 = vsel %vm217, %v676, 0.0
    %v679 = vadd.f32 %v677, %v678
    %680 = vadd.xlane.f32.xlu0 %v679
    %v681 = vpop.xlane.xlu0 %680
    %v682 = vrot.slane %v681, 4
    %v683 = vadd.f32 %v681, %v682
    %v684 = vrot.slane %v683, 2
    %v685 = vadd.f32 %v683, %v684
    %v686 = vrot.slane %v685, 1
    %v687 = vadd.f32 %v685, %v686
    %s688 = vtos %v687
    %v689 = vstv %s688
    %v690 = vrsqrt.pop %v689
    %v691 = vmul.f32 %v690, %v689
    %v692 = vmul.f32 %v691, %v690
    %v693 = vmul.f32 0.5, %v692
    %v694 = vsub.f32 1.5, %v693
    %v695 = vmul.f32 %v690, %v694
    %v696 = vmul.f32 %v689, %v695
    %vm697 = vcmp.eq.f32.partialorder %v689, inf
    %v698 = vsel %vm697, %v689, %v696
    %vm699 = vcmp.eq.f32.partialorder %v689, 0.0
    %v700 = vand.u32 %v689, 2147483648
    %v701 = vsel %vm699, %v700, %v698
    %s702 = vtos %v701
    %s703 = sadd.f32 %s702, 1e-12
    %v704 = vstv %s703
    %v705 = vrcp.pop %v704
    %v706 = vmul.f32 %v704, %v705
    %v707 = vsub.f32 1.0, %v706
    %v708 = vmul.f32 %v705, %v707
    %v709 = vadd.f32 %v705, %v708
    %vm710 = vweird.f32 %v704
    %vm711 = vweird.f32 %v705
    %vm712 = vmor %vm710, %vm711
    %v713 = vsel %vm712, %v705, %v709
    %v714 = vand.u32 2147483647, %v704
    %vm715 = vcmp.eq.f32.partialorder %v714, 8.507059e+37
    %v716 = vand.u32 %v704, 2147483648
    %v717 = vor.u32 1.1754944e-38, %v716
    %v718 = vsel %vm715, %v717, %v713
    %s719 = vtos %v718
    %v720 = vstv %s719
    %v721 = vmul.f32 %v653, %v720
    %v722 = vmul.f32 %v673, %v720
    %723 = vrot.lane.b32.xlu0 %v721, 17
    %v724 = vpop.permute.xlu0 %723
    %725 = vrot.lane.b32.xlu0 %v722, 17
    %v726 = vpop.permute.xlu0 %725
    %v727 = vsel %vm59, %v724, %v726
    %v728 = vsel %vm59, %v726, %v724
    %729 = vst [vmem:[#allocation3] sm:$0xf] %v728
    %730 = vst [vmem:[#allocation3 + $0x8] sm:$0xf] %v727
    %731 = vrot.lane.b32.xlu0 %v721, 16
    %v732 = vpop.permute.xlu0 %731
    %733 = vrot.lane.b32.xlu0 %v722, 16
    %v734 = vpop.permute.xlu0 %733
    %v735 = vsel %vm73, %v732, %v734
    %v736 = vsel %vm73, %v734, %v732
    %v739 = vrot.slane %v736, 4
    %v740 = vrot.slane %v735, 4
    %743 = vst [vmem:[#allocation3] sm:$0xf0] %v739
    %744 = vst [vmem:[#allocation3 + $0x8] sm:$0xf0] %v740
    %745 = vrot.lane.b32.xlu0 %v721, 15
    %v746 = vpop.permute.xlu0 %745
    %747 = vrot.lane.b32.xlu0 %v722, 15
    %v748 = vpop.permute.xlu0 %747
    %v749 = vsel %vm93, %v746, %v748
    %v750 = vsel %vm93, %v748, %v746
    %751 = vst [vmem:[#allocation3 + $0x10] sm:$0xf] %v750
    %752 = vst [vmem:[#allocation3 + $0x18] sm:$0xf] %v749
    %753 = vrot.lane.b32.xlu0 %v721, 1
    %v754 = vpop.permute.xlu0 %753
    %755 = vrot.lane.b32.xlu0 %v722, 1
    %v756 = vpop.permute.xlu0 %755
    %v757 = vsel %vm107, %v754, %v756
    %v758 = vsel %vm107, %v756, %v754
    %v761 = vrot.slane %v758, 4
    %v762 = vrot.slane %v757, 4
    %765 = vst [vmem:[#allocation3 + $0x10] sm:$0xf0] %v761
    %766 = vst [vmem:[#allocation3 + $0x18] sm:$0xf0] %v762
    %767 = vst [vmem:[#allocation3 + $0x20] sm:$0xf] %v721
    %768 = vst [vmem:[#allocation3 + $0x28] sm:$0xf] %v722
    %769 = vrot.lane.b32.xlu0 %v721, 127
    %v770 = vpop.permute.xlu0 %769
    %771 = vrot.lane.b32.xlu0 %v722, 127
    %v772 = vpop.permute.xlu0 %771
    %v773 = vsel %vm134, %v770, %v772
    %v774 = vsel %vm134, %v772, %v770
    %v777 = vrot.slane %v773, 4
    %v778 = vrot.slane %v774, 4
    %781 = vst [vmem:[#allocation3 + $0x20] sm:$0xf0] %v777
    %782 = vst [vmem:[#allocation3 + $0x28] sm:$0xf0] %v778
    %783 = vrot.lane.b32.xlu0 %v721, 113
    %v784 = vpop.permute.xlu0 %783
    %785 = vrot.lane.b32.xlu0 %v722, 113
    %v786 = vpop.permute.xlu0 %785
    %v787 = vsel %vm154, %v784, %v786
    %v788 = vsel %vm154, %v786, %v784
    %789 = vst [vmem:[#allocation3 + $0x30] sm:$0xf] %v787
    %790 = vst [vmem:[#allocation3 + $0x38] sm:$0xf] %v788
    %791 = vrot.lane.b32.xlu0 %v721, 112
    %v792 = vpop.permute.xlu0 %791
    %793 = vrot.lane.b32.xlu0 %v722, 112
    %v794 = vpop.permute.xlu0 %793
    %v795 = vsel %vm168, %v792, %v794
    %v796 = vsel %vm168, %v794, %v792
    %v799 = vrot.slane %v795, 4
    %v800 = vrot.slane %v796, 4
    %803 = vst [vmem:[#allocation3 + $0x30] sm:$0xf0] %v799
    %804 = vst [vmem:[#allocation3 + $0x38] sm:$0xf0] %v800
    %805 = vrot.lane.b32.xlu0 %v721, 111
    %v806 = vpop.permute.xlu0 %805
    %807 = vrot.lane.b32.xlu0 %v722, 111
    %v808 = vpop.permute.xlu0 %807
    %v809 = vsel %vm188, %v806, %v808
    %v810 = vsel %vm188, %v808, %v806
    %811 = vst [vmem:[#allocation3 + $0x40] sm:$0xf] %v809
    %812 = vst [vmem:[#allocation3 + $0x48] sm:$0xf] %v810
    %v813 = vld [vmem:[#allocation3] sm:$0xff]
    %v814 = vld [vmem:[#allocation3 + $0x8] sm:$0xff]
    %v815 = vld [vmem:[#allocation3 + $0x10] sm:$0xff]
    %v816 = vld [vmem:[#allocation3 + $0x18] sm:$0xff]
    %v817 = vld [vmem:[#allocation3 + $0x20] sm:$0xff]
    %v818 = vld [vmem:[#allocation3 + $0x28] sm:$0xff]
    %v819 = vld [vmem:[#allocation3 + $0x30] sm:$0xff]
    %v820 = vld [vmem:[#allocation3 + $0x38] sm:$0xff]
    %v821 = vld [vmem:[#allocation3 + $0x40] sm:$0xf]
    %v822 = vld [vmem:[#allocation3 + $0x48] sm:$0xf]
    %v823 = vmul.f32 %v813, %v36
    %v824 = vmul.f32 %v814, %v37
    %v825 = vmul.f32 %v815, %v38
    %v826 = vmul.f32 %v816, %v39
    %v827 = vmul.f32 %v817, %v40
    %v828 = vmul.f32 %v818, %v41
    %v829 = vmul.f32 %v819, %v42
    %v830 = vmul.f32 %v820, %v43
    %v831 = vmul.f32 %v821, %v44
    %v832 = vmul.f32 %v822, %v45
    %v834 = vsel %vm217, %v831, 0
    %v837 = vsel %vm217, %v832, 0
    %839 = vmatpush.msra.mxu0 0.0
    %840 = vmatpush.msra.mxu0 0.0
    %841 = vmatpush.msra.mxu0 0.0
    %842 = vmatpush.msra.mxu0 0.0
    %843 = vmatpush.msra.mxu0 0.0
    %844 = vmatpush.msra.mxu0 0.0
    %845 = vmatpush.msra.mxu0 0.0
    %846 = vmatpush.msra.mxu0 0.0
    %847 = vmatpush.msra.mxu0 0.0
    %848 = vmatpush.msra.mxu0 0.0
    %849 = vmatpush.msra.mxu0 0.0
    %850 = vmatpush.msra.mxu0 %v834
    %851 = vmatpush.msra.mxu0 %v829
    %852 = vmatpush.msra.mxu0 %v827
    %853 = vmatpush.msra.mxu0 %v825
    %854 = vmatpush.msra.mxu0 %v823
    %855 = vmatmul.f32.gmra.mxu0 %v423
    %v856 = vpop.f32.mrf.mxu0
    %v857 = vadd.f32 0.0, %v856
    %858 = vdwg.mxu0
    %859 = vmatpush.msra.mxu0 0.0
    %860 = vmatpush.msra.mxu0 0.0
    %861 = vmatpush.msra.mxu0 0.0
    %862 = vmatpush.msra.mxu0 0.0
    %863 = vmatpush.msra.mxu0 0.0
    %864 = vmatpush.msra.mxu0 0.0
    %865 = vmatpush.msra.mxu0 0.0
    %866 = vmatpush.msra.mxu0 0.0
    %867 = vmatpush.msra.mxu0 0.0
    %868 = vmatpush.msra.mxu0 0.0
    %869 = vmatpush.msra.mxu0 0.0
    %870 = vmatpush.msra.mxu0 %v837
    %871 = vmatpush.msra.mxu0 %v830
    %872 = vmatpush.msra.mxu0 %v828
    %873 = vmatpush.msra.mxu0 %v826
    %874 = vmatpush.msra.mxu0 %v824
    %875 = vmatmul.f32.gmra.mxu0 %v423
    %v876 = vpop.f32.mrf.mxu0
    %v877 = vadd.f32 0.0, %v876
    %878 = vdwg.mxu0
    %v879 = vmul.f32 %v857, %v857
    %v880 = vmul.f32 %v877, %v877
    %v881 = vsel %vm217, %v879, 0.0
    %v882 = vsel %vm217, %v880, 0.0
    %v883 = vadd.f32 %v881, %v882
    %884 = vadd.xlane.f32.xlu0 %v883
    %v885 = vpop.xlane.xlu0 %884
    %v886 = vrot.slane %v885, 4
    %v887 = vadd.f32 %v885, %v886
    %v888 = vrot.slane %v887, 2
    %v889 = vadd.f32 %v887, %v888
    %v890 = vrot.slane %v889, 1
    %v891 = vadd.f32 %v889, %v890
    %s892 = vtos %v891
    %v893 = vstv %s892
    %v894 = vrsqrt.pop %v893
    %v895 = vmul.f32 %v894, %v893
    %v896 = vmul.f32 %v895, %v894
    %v897 = vmul.f32 0.5, %v896
    %v898 = vsub.f32 1.5, %v897
    %v899 = vmul.f32 %v894, %v898
    %v900 = vmul.f32 %v893, %v899
    %vm901 = vcmp.eq.f32.partialorder %v893, inf
    %v902 = vsel %vm901, %v893, %v900
    %vm903 = vcmp.eq.f32.partialorder %v893, 0.0
    %v904 = vand.u32 %v893, 2147483648
    %v905 = vsel %vm903, %v904, %v902
    %s906 = vtos %v905
    %s907 = sadd.f32 %s906, 1e-12
    %v908 = vstv %s907
    %v909 = vrcp.pop %v908
    %v910 = vmul.f32 %v908, %v909
    %v911 = vsub.f32 1.0, %v910
    %v912 = vmul.f32 %v909, %v911
    %v913 = vadd.f32 %v909, %v912
    %vm914 = vweird.f32 %v908
    %vm915 = vweird.f32 %v909
    %vm916 = vmor %vm914, %vm915
    %v917 = vsel %vm916, %v909, %v913
    %v918 = vand.u32 2147483647, %v908
    %vm919 = vcmp.eq.f32.partialorder %v918, 8.507059e+37
    %v920 = vand.u32 %v908, 2147483648
    %v921 = vor.u32 1.1754944e-38, %v920
    %v922 = vsel %vm919, %v921, %v917
    %s923 = vtos %v922
    %v924 = vstv %s923
    %v925 = vmul.f32 %v857, %v924
    %v926 = vmul.f32 %v877, %v924
    %927 = vrot.lane.b32.xlu0 %v925, 17
    %v928 = vpop.permute.xlu0 %927
    %929 = vrot.lane.b32.xlu0 %v926, 17
    %v930 = vpop.permute.xlu0 %929
    %v931 = vsel %vm59, %v928, %v930
    %v932 = vsel %vm59, %v930, %v928
    %933 = vst [vmem:[#allocation2] sm:$0xf] %v932
    %934 = vst [vmem:[#allocation2 + $0x8] sm:$0xf] %v931
    %935 = vrot.lane.b32.xlu0 %v925, 16
    %v936 = vpop.permute.xlu0 %935
    %937 = vrot.lane.b32.xlu0 %v926, 16
    %v938 = vpop.permute.xlu0 %937
    %v939 = vsel %vm73, %v936, %v938
    %v940 = vsel %vm73, %v938, %v936
    %v943 = vrot.slane %v940, 4
    %v944 = vrot.slane %v939, 4
    %947 = vst [vmem:[#allocation2] sm:$0xf0] %v943
    %948 = vst [vmem:[#allocation2 + $0x8] sm:$0xf0] %v944
    %949 = vrot.lane.b32.xlu0 %v925, 15
    %v950 = vpop.permute.xlu0 %949
    %951 = vrot.lane.b32.xlu0 %v926, 15
    %v952 = vpop.permute.xlu0 %951
    %v953 = vsel %vm93, %v950, %v952
    %v954 = vsel %vm93, %v952, %v950
    %955 = vst [vmem:[#allocation2 + $0x10] sm:$0xf] %v954
    %956 = vst [vmem:[#allocation2 + $0x18] sm:$0xf] %v953
    %957 = vrot.lane.b32.xlu0 %v925, 1
    %v958 = vpop.permute.xlu0 %957
    %959 = vrot.lane.b32.xlu0 %v926, 1
    %v960 = vpop.permute.xlu0 %959
    %v961 = vsel %vm107, %v958, %v960
    %v962 = vsel %vm107, %v960, %v958
    %v965 = vrot.slane %v962, 4
    %v966 = vrot.slane %v961, 4
    %969 = vst [vmem:[#allocation2 + $0x10] sm:$0xf0] %v965
    %970 = vst [vmem:[#allocation2 + $0x18] sm:$0xf0] %v966
    %971 = vst [vmem:[#allocation2 + $0x20] sm:$0xf] %v925
    %972 = vst [vmem:[#allocation2 + $0x28] sm:$0xf] %v926
    %973 = vrot.lane.b32.xlu0 %v925, 127
    %v974 = vpop.permute.xlu0 %973
    %975 = vrot.lane.b32.xlu0 %v926, 127
    %v976 = vpop.permute.xlu0 %975
    %v977 = vsel %vm134, %v974, %v976
    %v978 = vsel %vm134, %v976, %v974
    %v981 = vrot.slane %v977, 4
    %v982 = vrot.slane %v978, 4
    %985 = vst [vmem:[#allocation2 + $0x20] sm:$0xf0] %v981
    %986 = vst [vmem:[#allocation2 + $0x28] sm:$0xf0] %v982
    %987 = vrot.lane.b32.xlu0 %v925, 113
    %v988 = vpop.permute.xlu0 %987
    %989 = vrot.lane.b32.xlu0 %v926, 113
    %v990 = vpop.permute.xlu0 %989
    %v991 = vsel %vm154, %v988, %v990
    %v992 = vsel %vm154, %v990, %v988
    %993 = vst [vmem:[#allocation2 + $0x30] sm:$0xf] %v991
    %994 = vst [vmem:[#allocation2 + $0x38] sm:$0xf] %v992
    %995 = vrot.lane.b32.xlu0 %v925, 112
    %v996 = vpop.permute.xlu0 %995
    %997 = vrot.lane.b32.xlu0 %v926, 112
    %v998 = vpop.permute.xlu0 %997
    %v999 = vsel %vm168, %v996, %v998
    %v1000 = vsel %vm168, %v998, %v996
    %v1003 = vrot.slane %v999, 4
    %v1004 = vrot.slane %v1000, 4
    %1007 = vst [vmem:[#allocation2 + $0x30] sm:$0xf0] %v1003
    %1008 = vst [vmem:[#allocation2 + $0x38] sm:$0xf0] %v1004
    %1009 = vrot.lane.b32.xlu0 %v925, 111
    %v1010 = vpop.permute.xlu0 %1009
    %1011 = vrot.lane.b32.xlu0 %v926, 111
    %v1012 = vpop.permute.xlu0 %1011
    %v1013 = vsel %vm188, %v1010, %v1012
    %v1014 = vsel %vm188, %v1012, %v1010
    %1015 = vst [vmem:[#allocation2 + $0x40] sm:$0xf] %v1013
    %1016 = vst [vmem:[#allocation2 + $0x48] sm:$0xf] %v1014
    %v1017 = vld [vmem:[#allocation2] sm:$0xff]
    %v1018 = vld [vmem:[#allocation2 + $0x8] sm:$0xff]
    %v1019 = vld [vmem:[#allocation2 + $0x10] sm:$0xff]
    %v1020 = vld [vmem:[#allocation2 + $0x18] sm:$0xff]
    %v1021 = vld [vmem:[#allocation2 + $0x20] sm:$0xff]
    %v1022 = vld [vmem:[#allocation2 + $0x28] sm:$0xff]
    %v1023 = vld [vmem:[#allocation2 + $0x30] sm:$0xff]
    %v1024 = vld [vmem:[#allocation2 + $0x38] sm:$0xff]
    %v1025 = vld [vmem:[#allocation2 + $0x40] sm:$0xf]
    %v1026 = vld [vmem:[#allocation2 + $0x48] sm:$0xf]
    %v1027 = vmul.f32 %v1017, %v26
    %v1028 = vmul.f32 %v1018, %v27
    %v1029 = vmul.f32 %v1019, %v28
    %v1030 = vmul.f32 %v1020, %v29
    %v1031 = vmul.f32 %v1021, %v30
    %v1032 = vmul.f32 %v1022, %v31
    %v1033 = vmul.f32 %v1023, %v32
    %v1034 = vmul.f32 %v1024, %v33
    %v1035 = vmul.f32 %v1025, %v34
    %v1036 = vmul.f32 %v1026, %v35
    %v1038 = vsel %vm217, %v1035, 0
    %v1041 = vsel %vm217, %v1036, 0
    %1043 = vmatpush.msra.mxu0 0.0
    %1044 = vmatpush.msra.mxu0 0.0
    %1045 = vmatpush.msra.mxu0 0.0
    %1046 = vmatpush.msra.mxu0 0.0
    %1047 = vmatpush.msra.mxu0 0.0
    %1048 = vmatpush.msra.mxu0 0.0
    %1049 = vmatpush.msra.mxu0 0.0
    %1050 = vmatpush.msra.mxu0 0.0
    %1051 = vmatpush.msra.mxu0 0.0
    %1052 = vmatpush.msra.mxu0 0.0
    %1053 = vmatpush.msra.mxu0 0.0
    %1054 = vmatpush.msra.mxu0 %v1038
    %1055 = vmatpush.msra.mxu0 %v1033
    %1056 = vmatpush.msra.mxu0 %v1031
    %1057 = vmatpush.msra.mxu0 %v1029
    %1058 = vmatpush.msra.mxu0 %v1027
    %1059 = vmatmul.f32.gmra.mxu0 %v215
    %v1060 = vpop.f32.mrf.mxu0
    %v1061 = vadd.f32 0.0, %v1060
    %1062 = vdwg.mxu0
    %1063 = vmatpush.msra.mxu0 0.0
    %1064 = vmatpush.msra.mxu0 0.0
    %1065 = vmatpush.msra.mxu0 0.0
    %1066 = vmatpush.msra.mxu0 0.0
    %1067 = vmatpush.msra.mxu0 0.0
    %1068 = vmatpush.msra.mxu0 0.0
    %1069 = vmatpush.msra.mxu0 0.0
    %1070 = vmatpush.msra.mxu0 0.0
    %1071 = vmatpush.msra.mxu0 0.0
    %1072 = vmatpush.msra.mxu0 0.0
    %1073 = vmatpush.msra.mxu0 0.0
    %1074 = vmatpush.msra.mxu0 %v1041
    %1075 = vmatpush.msra.mxu0 %v1034
    %1076 = vmatpush.msra.mxu0 %v1032
    %1077 = vmatpush.msra.mxu0 %v1030
    %1078 = vmatpush.msra.mxu0 %v1028
    %1079 = vmatmul.f32.gmra.mxu0 %v215
    %v1080 = vpop.f32.mrf.mxu0
    %v1081 = vadd.f32 0.0, %v1080
    %1082 = vdwg.mxu0
    %v1083 = vmul.f32 %v1061, %v1061
    %v1084 = vmul.f32 %v1081, %v1081
    %v1085 = vsel %vm217, %v1083, 0.0
    %v1086 = vsel %vm217, %v1084, 0.0
    %v1087 = vadd.f32 %v1085, %v1086
    %1088 = vadd.xlane.f32.xlu0 %v1087
    %v1089 = vpop.xlane.xlu0 %1088
    %v1090 = vrot.slane %v1089, 4
    %v1091 = vadd.f32 %v1089, %v1090
    %v1092 = vrot.slane %v1091, 2
    %v1093 = vadd.f32 %v1091, %v1092
    %v1094 = vrot.slane %v1093, 1
    %v1095 = vadd.f32 %v1093, %v1094
    %s1096 = vtos %v1095
    %v1097 = vstv %s1096
    %v1098 = vrsqrt.pop %v1097
    %v1099 = vmul.f32 %v1098, %v1097
    %v1100 = vmul.f32 %v1099, %v1098
    %v1101 = vmul.f32 0.5, %v1100
    %v1102 = vsub.f32 1.5, %v1101
    %v1103 = vmul.f32 %v1098, %v1102
    %v1104 = vmul.f32 %v1097, %v1103
    %vm1105 = vcmp.eq.f32.partialorder %v1097, inf
    %v1106 = vsel %vm1105, %v1097, %v1104
    %vm1107 = vcmp.eq.f32.partialorder %v1097, 0.0
    %v1108 = vand.u32 %v1097, 2147483648
    %v1109 = vsel %vm1107, %v1108, %v1106
    %s1110 = vtos %v1109
    %s1111 = sadd.f32 %s1110, 1e-12
    %v1112 = vstv %s1111
    %v1113 = vrcp.pop %v1112
    %v1114 = vmul.f32 %v1112, %v1113
    %v1115 = vsub.f32 1.0, %v1114
    %v1116 = vmul.f32 %v1113, %v1115
    %v1117 = vadd.f32 %v1113, %v1116
    %vm1118 = vweird.f32 %v1112
    %vm1119 = vweird.f32 %v1113
    %vm1120 = vmor %vm1118, %vm1119
    %v1121 = vsel %vm1120, %v1113, %v1117
    %v1122 = vand.u32 2147483647, %v1112
    %vm1123 = vcmp.eq.f32.partialorder %v1122, 8.507059e+37
    %v1124 = vand.u32 %v1112, 2147483648
    %v1125 = vor.u32 1.1754944e-38, %v1124
    %v1126 = vsel %vm1123, %v1125, %v1121
    %s1127 = vtos %v1126
    %v1128 = vstv %s1127
    %v1129 = vmul.f32 %v1061, %v1128
    %v1130 = vmul.f32 %v1081, %v1128
    %1131 = vrot.lane.b32.xlu0 %v1129, 17
    %v1132 = vpop.permute.xlu0 %1131
    %1133 = vrot.lane.b32.xlu0 %v1130, 17
    %v1134 = vpop.permute.xlu0 %1133
    %v1135 = vsel %vm59, %v1132, %v1134
    %v1136 = vsel %vm59, %v1134, %v1132
    %1137 = vst [vmem:[#allocation3] sm:$0xf] %v1136
    %1138 = vst [vmem:[#allocation3 + $0x8] sm:$0xf] %v1135
    %1139 = vrot.lane.b32.xlu0 %v1129, 16
    %v1140 = vpop.permute.xlu0 %1139
    %1141 = vrot.lane.b32.xlu0 %v1130, 16
    %v1142 = vpop.permute.xlu0 %1141
    %v1143 = vsel %vm73, %v1140, %v1142
    %v1144 = vsel %vm73, %v1142, %v1140
    %v1147 = vrot.slane %v1144, 4
    %v1148 = vrot.slane %v1143, 4
    %1151 = vst [vmem:[#allocation3] sm:$0xf0] %v1147
    %1152 = vst [vmem:[#allocation3 + $0x8] sm:$0xf0] %v1148
    %1153 = vrot.lane.b32.xlu0 %v1129, 15
    %v1154 = vpop.permute.xlu0 %1153
    %1155 = vrot.lane.b32.xlu0 %v1130, 15
    %v1156 = vpop.permute.xlu0 %1155
    %v1157 = vsel %vm93, %v1154, %v1156
    %v1158 = vsel %vm93, %v1156, %v1154
    %1159 = vst [vmem:[#allocation3 + $0x10] sm:$0xf] %v1158
    %1160 = vst [vmem:[#allocation3 + $0x18] sm:$0xf] %v1157
    %1161 = vrot.lane.b32.xlu0 %v1129, 1
    %v1162 = vpop.permute.xlu0 %1161
    %1163 = vrot.lane.b32.xlu0 %v1130, 1
    %v1164 = vpop.permute.xlu0 %1163
    %v1165 = vsel %vm107, %v1162, %v1164
    %v1166 = vsel %vm107, %v1164, %v1162
    %v1169 = vrot.slane %v1166, 4
    %v1170 = vrot.slane %v1165, 4
    %1173 = vst [vmem:[#allocation3 + $0x10] sm:$0xf0] %v1169
    %1174 = vst [vmem:[#allocation3 + $0x18] sm:$0xf0] %v1170
    %1175 = vst [vmem:[#allocation3 + $0x20] sm:$0xf] %v1129
    %1176 = vst [vmem:[#allocation3 + $0x28] sm:$0xf] %v1130
    %1177 = vrot.lane.b32.xlu0 %v1129, 127
    %v1178 = vpop.permute.xlu0 %1177
    %1179 = vrot.lane.b32.xlu0 %v1130, 127
    %v1180 = vpop.permute.xlu0 %1179
    %v1181 = vsel %vm134, %v1178, %v1180
    %v1182 = vsel %vm134, %v1180, %v1178
    %v1185 = vrot.slane %v1181, 4
    %v1186 = vrot.slane %v1182, 4
    %1189 = vst [vmem:[#allocation3 + $0x20] sm:$0xf0] %v1185
    %1190 = vst [vmem:[#allocation3 + $0x28] sm:$0xf0] %v1186
    %1191 = vrot.lane.b32.xlu0 %v1129, 113
    %v1192 = vpop.permute.xlu0 %1191
    %1193 = vrot.lane.b32.xlu0 %v1130, 113
    %v1194 = vpop.permute.xlu0 %1193
    %v1195 = vsel %vm154, %v1192, %v1194
    %v1196 = vsel %vm154, %v1194, %v1192
    %1197 = vst [vmem:[#allocation3 + $0x30] sm:$0xf] %v1195
    %1198 = vst [vmem:[#allocation3 + $0x38] sm:$0xf] %v1196
    %1199 = vrot.lane.b32.xlu0 %v1129, 112
    %v1200 = vpop.permute.xlu0 %1199
    %1201 = vrot.lane.b32.xlu0 %v1130, 112
    %v1202 = vpop.permute.xlu0 %1201
    %v1203 = vsel %vm168, %v1200, %v1202
    %v1204 = vsel %vm168, %v1202, %v1200
    %v1207 = vrot.slane %v1203, 4
    %v1208 = vrot.slane %v1204, 4
    %1211 = vst [vmem:[#allocation3 + $0x30] sm:$0xf0] %v1207
    %1212 = vst [vmem:[#allocation3 + $0x38] sm:$0xf0] %v1208
    %1213 = vrot.lane.b32.xlu0 %v1129, 111
    %v1214 = vpop.permute.xlu0 %1213
    %1215 = vrot.lane.b32.xlu0 %v1130, 111
    %v1216 = vpop.permute.xlu0 %1215
    %v1217 = vsel %vm188, %v1214, %v1216
    %v1218 = vsel %vm188, %v1216, %v1214
    %1219 = vst [vmem:[#allocation3 + $0x40] sm:$0xf] %v1217
    %1220 = vst [vmem:[#allocation3 + $0x48] sm:$0xf] %v1218
    %v1221 = vld [vmem:[#allocation3] sm:$0xff]
    %v1222 = vld [vmem:[#allocation3 + $0x8] sm:$0xff]
    %v1223 = vld [vmem:[#allocation3 + $0x10] sm:$0xff]
    %v1224 = vld [vmem:[#allocation3 + $0x18] sm:$0xff]
    %v1225 = vld [vmem:[#allocation3 + $0x20] sm:$0xff]
    %v1226 = vld [vmem:[#allocation3 + $0x28] sm:$0xff]
    %v1227 = vld [vmem:[#allocation3 + $0x30] sm:$0xff]
    %v1228 = vld [vmem:[#allocation3 + $0x38] sm:$0xff]
    %v1229 = vld [vmem:[#allocation3 + $0x40] sm:$0xf]
    %v1230 = vld [vmem:[#allocation3 + $0x48] sm:$0xf]
    %v1231 = vmul.f32 %v1221, %v36
    %v1232 = vmul.f32 %v1222, %v37
    %v1233 = vmul.f32 %v1223, %v38
    %v1234 = vmul.f32 %v1224, %v39
    %v1235 = vmul.f32 %v1225, %v40
    %v1236 = vmul.f32 %v1226, %v41
    %v1237 = vmul.f32 %v1227, %v42
    %v1238 = vmul.f32 %v1228, %v43
    %v1239 = vmul.f32 %v1229, %v44
    %v1240 = vmul.f32 %v1230, %v45
    %v1242 = vsel %vm217, %v1239, 0
    %v1245 = vsel %vm217, %v1240, 0
    %1247 = vmatpush.msra.mxu0 0.0
    %1248 = vmatpush.msra.mxu0 0.0
    %1249 = vmatpush.msra.mxu0 0.0
    %1250 = vmatpush.msra.mxu0 0.0
    %1251 = vmatpush.msra.mxu0 0.0
    %1252 = vmatpush.msra.mxu0 0.0
    %1253 = vmatpush.msra.mxu0 0.0
    %1254 = vmatpush.msra.mxu0 0.0
    %1255 = vmatpush.msra.mxu0 0.0
    %1256 = vmatpush.msra.mxu0 0.0
    %1257 = vmatpush.msra.mxu0 0.0
    %1258 = vmatpush.msra.mxu0 %v1242
    %1259 = vmatpush.msra.mxu0 %v1237
    %1260 = vmatpush.msra.mxu0 %v1235
    %1261 = vmatpush.msra.mxu0 %v1233
    %1262 = vmatpush.msra.mxu0 %v1231
    %1263 = vmatmul.f32.gmra.mxu0 %v423
    %v1264 = vpop.f32.mrf.mxu0
    %v1265 = vadd.f32 0.0, %v1264
    %1266 = vdwg.mxu0
    %1267 = vmatpush.msra.mxu0 0.0
    %1268 = vmatpush.msra.mxu0 0.0
    %1269 = vmatpush.msra.mxu0 0.0
    %1270 = vmatpush.msra.mxu0 0.0
    %1271 = vmatpush.msra.mxu0 0.0
    %1272 = vmatpush.msra.mxu0 0.0
    %1273 = vmatpush.msra.mxu0 0.0
    %1274 = vmatpush.msra.mxu0 0.0
    %1275 = vmatpush.msra.mxu0 0.0
    %1276 = vmatpush.msra.mxu0 0.0
    %1277 = vmatpush.msra.mxu0 0.0
    %1278 = vmatpush.msra.mxu0 %v1245
    %1279 = vmatpush.msra.mxu0 %v1238
    %1280 = vmatpush.msra.mxu0 %v1236
    %1281 = vmatpush.msra.mxu0 %v1234
    %1282 = vmatpush.msra.mxu0 %v1232
    %1283 = vmatmul.f32.gmra.mxu0 %v423
    %v1284 = vpop.f32.mrf.mxu0
    %v1285 = vadd.f32 0.0, %v1284
    %1286 = vdwg.mxu0
    %v1287 = vmul.f32 %v1265, %v1265
    %v1288 = vmul.f32 %v1285, %v1285
    %v1289 = vsel %vm217, %v1287, 0.0
    %v1290 = vsel %vm217, %v1288, 0.0
    %v1291 = vadd.f32 %v1289, %v1290
    %1292 = vadd.xlane.f32.xlu0 %v1291
    %v1293 = vpop.xlane.xlu0 %1292
    %v1294 = vrot.slane %v1293, 4
    %v1295 = vadd.f32 %v1293, %v1294
    %v1296 = vrot.slane %v1295, 2
    %v1297 = vadd.f32 %v1295, %v1296
    %v1298 = vrot.slane %v1297, 1
    %v1299 = vadd.f32 %v1297, %v1298
    %s1300 = vtos %v1299
    %v1301 = vstv %s1300
    %v1302 = vrsqrt.pop %v1301
    %v1303 = vmul.f32 %v1302, %v1301
    %v1304 = vmul.f32 %v1303, %v1302
    %v1305 = vmul.f32 0.5, %v1304
    %v1306 = vsub.f32 1.5, %v1305
    %v1307 = vmul.f32 %v1302, %v1306
    %v1308 = vmul.f32 %v1301, %v1307
    %vm1309 = vcmp.eq.f32.partialorder %v1301, inf
    %v1310 = vsel %vm1309, %v1301, %v1308
    %vm1311 = vcmp.eq.f32.partialorder %v1301, 0.0
    %v1312 = vand.u32 %v1301, 2147483648
    %v1313 = vsel %vm1311, %v1312, %v1310
    %s1314 = vtos %v1313
    %s1315 = sadd.f32 %s1314, 1e-12
    %v1316 = vstv %s1315
    %v1317 = vrcp.pop %v1316
    %v1318 = vmul.f32 %v1316, %v1317
    %v1319 = vsub.f32 1.0, %v1318
    %v1320 = vmul.f32 %v1317, %v1319
    %v1321 = vadd.f32 %v1317, %v1320
    %vm1322 = vweird.f32 %v1316
    %vm1323 = vweird.f32 %v1317
    %vm1324 = vmor %vm1322, %vm1323
    %v1325 = vsel %vm1324, %v1317, %v1321
    %v1326 = vand.u32 2147483647, %v1316
    %vm1327 = vcmp.eq.f32.partialorder %v1326, 8.507059e+37
    %v1328 = vand.u32 %v1316, 2147483648
    %v1329 = vor.u32 1.1754944e-38, %v1328
    %v1330 = vsel %vm1327, %v1329, %v1325
    %s1331 = vtos %v1330
    %v1332 = vstv %s1331
    %v1333 = vmul.f32 %v1265, %v1332
    %v1334 = vmul.f32 %v1285, %v1332
    %v1335 = vstv %s1314
    %vm1336 = vcmask 0
    %1337 = vst.msk [vmem:[#allocation4] sm:$0x1] %vm1336, %v1335
    %v1340 = vrot.slane %v1334, 4
    %v1341 = vsel %vm217, %v1333, %v1340
    %1343 = vst [vmem:[#allocation6] sm:$0xff] %v1341
    // Predicated region
    $region22: #{_conv_sigma.1} parent=1 // pred_check
      _
    $region23: #{_conv_sigma.1} parent=1 // pred_check_branch
      %1345 = sbr.rel (0) target = $region25
    $region24: #{_conv_sigma.1} parent=1 // pred_region
      %1347 = vsyncadd [#allocation5], 0
      %s1349 = sshll.u32 [#allocation4], 4
      %s1350 = int_to_ptr.vmem [resolvable:$true] %s1349
      %s1351 = sshll.u32 %s5, 4
      %s1352 = int_to_ptr.hbm [resolvable:$true] %s1351
      %1354 = dma.vmem_to_hbm [thread:$0]  %s1350, 16, %s1352, [#allocation5]
    $region25: #{_conv_sigma.1} parent=1 // pred_fallthru
      _
    // Predicated region
    $region26: #{_conv_sigma.1} parent=1 // pred_check
      _
    $region27: #{_conv_sigma.1} parent=1 // pred_check_branch
      %1356 = sbr.rel (0) target = $region29
    $region28: #{_conv_sigma.1} parent=1 // pred_region
      %1358 = vsyncadd [#allocation7], 0
      %s1360 = sshll.u32 [#allocation6], 4
      %s1361 = int_to_ptr.vmem [resolvable:$true] %s1360
      %s1362 = sshll.u32 %s6, 4
      %s1363 = int_to_ptr.hbm [resolvable:$true] %s1362
      %1365 = dma.vmem_to_hbm [thread:$0]  %s1361, 128, %s1363, [#allocation7]
    $region29: #{_conv_sigma.1} parent=1 // pred_fallthru
      _
    // Predicated region
    $region30: #{_conv_sigma.1} parent=1 // pred_check
      _
    $region31: #{_conv_sigma.1} parent=1 // pred_check_branch
      %1367 = sbr.rel (0) target = $region33
    $region32: #{_conv_sigma.1} parent=1 // pred_region
      %1369 = dma.done [#allocation5], 16
    $region33: #{_conv_sigma.1} parent=1 // pred_fallthru
      _
    // Predicated region
    $region34: #{_conv_sigma.1} parent=1 // pred_check
      _
    $region35: #{_conv_sigma.1} parent=1 // pred_check_branch
      %1371 = sbr.rel (0) target = $region37
    $region36: #{_conv_sigma.1} parent=1 // pred_region
      %1373 = dma.done [#allocation7], 128
    $region37: #{_conv_sigma.1} parent=1 // pred_fallthru
      _
    %1374 = vsyncpa [#allocation5], 1
    %1375 = vsyncpa [#allocation7], 1

</llo_original>
